<compile_context>
chip_gen: v6e
topology: v6e:2x2x1
jax: 0.10.0
libtpu: 0.0.40
codegen_flags: <defaults>
</compile_context>

<pallas_src>
import functools

import jax
import jax.numpy as jnp
import numpy as np
from jax.experimental import pallas as pl
from jax.experimental.pallas import tpu as pltpu


def _cbam_fused_kernel(x_ref, w1t_ref, w2_ref, wmask_ref, out_ref,
                       att_ref, pm2_ref, *, Bblk, C, HW, offsets):
    """Fused CBAM forward for Bblk images.

    x_ref    : (Bblk*C, HW)      input rows; row b*C + c = (image b, channel c)
    w1t_ref  : (C, Cr)           Conv2d(C->Cr, 1x1).weight transposed
    w2_ref   : (C, Cr)           Conv2d(Cr->C, 1x1).weight
    wmask_ref: (49, 2*Bblk, HW)  per-tap (7x7 weight * zero-pad mask); rows
                                 0..Bblk-1 use the mean-plane weight, the rest
                                 the max-plane weight
    out_ref  : (Bblk*C, HW)      refined output rows
    att_ref  : (Bblk*C, 1)       VMEM scratch: per-row channel attention
    pm2_ref  : (2*Bblk, 2*HW)    VMEM scratch: lane-doubled pooled maps
    """
    f32 = jnp.float32
    x = x_ref[...].astype(f32)                       # (Bblk*C, HW)
    w1t = w1t_ref[...].astype(f32)                   # (C, Cr)
    w2 = w2_ref[...].astype(f32)                     # (C, Cr)

    # ---------------- Channel attention (CAM) ----------------
    avg = jnp.mean(x, axis=1, keepdims=True)         # (Bblk*C, 1)  AdaptiveAvgPool2d(1)
    mx = jnp.max(x, axis=1, keepdims=True)           # (Bblk*C, 1)  AdaptiveMaxPool2d(1)

    def shared_mlp(v):                               # v: (C, 1)
        # hidden[r] = relu(sum_c w1[r, c] * v[c])            -> (1, Cr)
        hid = jnp.maximum(jnp.sum(w1t * v, axis=0, keepdims=True), 0.0)
        # out[c]   = sum_r w2[c, r] * hidden[r]              -> (C, 1)
        return jnp.sum(w2 * hid, axis=1, keepdims=True)

    for b in range(Bblk):                            # tiny static loop: MLP is O(C*Cr)
        rows = slice(b * C, (b + 1) * C)
        att_ref[rows, :] = jax.nn.sigmoid(
            shared_mlp(avg[rows]) + shared_mlp(mx[rows]))

    xa = x * att_ref[...]                            # (Bblk*C, HW) full-width apply

    # ---------------- Spatial attention (SAM) ----------------
    # Stack all per-image channel-mean / channel-max maps and write them twice
    # side-by-side so any tap window is a contiguous static lane slice.
    for b in range(Bblk):
        xa_b = xa[b * C:(b + 1) * C, :]              # (C, HW)
        mean_map = jnp.mean(xa_b, axis=0, keepdims=True)   # (1, HW)
        max_map = jnp.max(xa_b, axis=0, keepdims=True)     # (1, HW)
        pm2_ref[b:b + 1, 0:HW] = mean_map
        pm2_ref[b:b + 1, HW:2 * HW] = mean_map
        pm2_ref[Bblk + b:Bblk + b + 1, 0:HW] = max_map
        pm2_ref[Bblk + b:Bblk + b + 1, HW:2 * HW] = max_map

    # 7x7 conv with padding=3 on the flattened maps: the (dh, dw) tap of output
    # pixel i reads flat index i + dh*W + dw, i.e. the doubled buffer at static
    # offset (dh*W + dw) mod HW.  Weights and zero-pad masks live in wmask, so
    # each tap is one window load + one FMA for the whole (2*Bblk, HW) stack.
    accs = [jnp.zeros((2 * Bblk, HW), f32) for _ in range(4)]
    for t in range(49):
        o = offsets[t]
        win = pm2_ref[:, o:o + HW]                   # (2*Bblk, HW)
        accs[t % 4] = accs[t % 4] + win * wmask_ref[t]
    acc = (accs[0] + accs[1]) + (accs[2] + accs[3])  # (2*Bblk, HW)

    # combine mean-plane and max-plane partial sums -> per-image logits
    att_s = jax.nn.sigmoid(acc[:Bblk, :] + acc[Bblk:, :])    # (Bblk, HW)

    # ---------------- Apply spatial attention ----------------
    for b in range(Bblk):
        rows = slice(b * C, (b + 1) * C)
        out_ref[rows, :] = (xa[rows, :] * att_s[b:b + 1, :]).astype(out_ref.dtype)


def _pick_bblk(B, C, HW, itemsize=4, vmem_budget=8 << 20):
    """Pick the batch block: keep (Bblk*C, HW) blocks (8,128)-tileable, fit a
    conservative VMEM budget, and prefer >=2 grid steps (v7x has 2 TCs)."""
    valid = [d for d in range(1, B + 1)
             if B % d == 0 and (d == B or (d * C) % 8 == 0)]
    fitting = [d for d in valid if 4 * d * C * HW * itemsize <= vmem_budget]
    if not fitting:
        return valid[0]
    multi = [d for d in fitting if B // d >= 2]
    return max(multi) if multi else max(fitting)


def cbam_forward(x, w1, w2, wsp, *, bblk=None):
    """CBAM_2_ChannelActivation forward (channel_activation_type='relu').

    x:   (B, C, H, W) NCHW input
    w1:  (Cr, C)      ChannelAttention Conv2d(C->Cr, 1x1, bias=False).weight[:, :, 0, 0]
    w2:  (C, Cr)      ChannelAttention Conv2d(Cr->C, 1x1, bias=False).weight[:, :, 0, 0]
    wsp: (1, 2, 7, 7) SpatialAttention Conv2d(2->1, 7x7, padding=3, bias=False).weight
    """
    B, C, H, W = x.shape
    HW = H * W
    Cr = w1.shape[0]
    if bblk is None:
        bblk = _pick_bblk(B, C, HW, itemsize=x.dtype.itemsize)
    assert B % bblk == 0

    x2 = x.reshape(B * C, HW)          # free row-major reshape (no transpose)
    w1t = jnp.transpose(w1)            # (C, Cr)

    # Trace-time (numpy) boundary masks for the 49 taps of the 7x7 conv over the
    # flattened H*W axis, and each tap's flat lane offset into the doubled maps.
    lane = np.arange(HW, dtype=np.int64)
    h_idx, w_idx = lane // W, lane % W
    masks = np.empty((49, HW), np.float32)
    offsets = []
    for kh in range(7):
        dh = kh - 3
        h_ok = (h_idx + dh >= 0) & (h_idx + dh < H)
        for kw in range(7):
            dw = kw - 3
            w_ok = (w_idx + dw >= 0) & (w_idx + dw < W)
            masks[kh * 7 + kw] = (h_ok & w_ok).astype(np.float32)
            offsets.append(int((dh * W + dw) % HW))

    # Fold the conv weights into the masks: wmask[t, r, :] is the tap-t weight of
    # the mean plane (rows < bblk) or max plane (rows >= bblk), zeroed where the
    # tap would read outside the zero-padded image.
    wsp2 = jnp.asarray(wsp).reshape(2, 49).astype(jnp.float32)       # (plane, tap)
    rows_w = jnp.repeat(wsp2, bblk, axis=0)                          # (2*bblk, 49)
    wmask = rows_w.T[:, :, None] * jnp.asarray(masks)[:, None, :]    # (49, 2*bblk, HW)

    kernel = functools.partial(_cbam_fused_kernel, Bblk=bblk, C=C, HW=HW,
                               offsets=tuple(offsets))

    out2 = pl.pallas_call(
        kernel,
        out_shape=jax.ShapeDtypeStruct((B * C, HW), x.dtype),
        grid=(B // bblk,),
        in_specs=[
            pl.BlockSpec((bblk * C, HW), lambda i: (i, 0)),           # x rows
            pl.BlockSpec((C, Cr), lambda i: (0, 0)),                  # w1t
            pl.BlockSpec((C, Cr), lambda i: (0, 0)),                  # w2
            pl.BlockSpec((49, 2 * bblk, HW), lambda i: (0, 0, 0)),    # wmask
        ],
        out_specs=pl.BlockSpec((bblk * C, HW), lambda i: (i, 0)),
        scratch_shapes=[
            pltpu.VMEM((bblk * C, 1), jnp.float32),       # per-row channel attention
            pltpu.VMEM((2 * bblk, 2 * HW), jnp.float32),  # lane-doubled pooled maps
        ],
        compiler_params=pltpu.CompilerParams(
            dimension_semantics=("parallel",),
            vmem_limit_bytes=32 * 1024 * 1024,
        ),
    )(x2, w1t, w2, wmask)

    return out2.reshape(B, C, H, W)


def cbam_ref(x, w1, w2, wsp):
    """Pure-JAX reference mirroring the PyTorch module."""
    avg = jnp.mean(x, axis=(2, 3), keepdims=True)     # (B,C,1,1)
    mx = jnp.max(x, axis=(2, 3), keepdims=True)

    def mlp(v):
        vv = v[:, :, 0, 0]                            # (B,C)
        h = jnp.maximum(vv @ w1.T, 0.0)               # (B,Cr)
        return (h @ w2.T)[:, :, None, None]           # (B,C,1,1)

    att = jax.nn.sigmoid(mlp(avg) + mlp(mx))
    xa = x * att
    mean_c = jnp.mean(xa, axis=1, keepdims=True)
    max_c = jnp.max(xa, axis=1, keepdims=True)
    pooled = jnp.concatenate([mean_c, max_c], axis=1)
    conv = jax.lax.conv_general_dilated(
        pooled, wsp, window_strides=(1, 1), padding=((3, 3), (3, 3)),
        dimension_numbers=("NCHW", "OIHW", "NCHW"))
    satt = jax.nn.sigmoid(conv)
    return xa * satt


if __name__ == "__main__":
    key = jax.random.PRNGKey(0)
    k1, k2, k3, k4 = jax.random.split(key, 4)

    B, C, H, W = 2, 4, 16, 16
    reduction_ratio = 16
    Cr = max(1, C // reduction_ratio)                 # = 1

    x = jax.random.normal(k1, (B, C, H, W), jnp.float32)
    # Deterministic synthetic parameters (shapes match the nn.Module's __init__):
    w1 = jax.random.normal(k2, (Cr, C), jnp.float32) * 0.5        # Conv2d(C->Cr,1x1).weight
    w2 = jax.random.normal(k3, (C, Cr), jnp.float32) * 0.5        # Conv2d(Cr->C,1x1).weight
    wsp = jax.random.normal(k4, (1, 2, 7, 7), jnp.float32) * 0.2  # SpatialAttention weight

    out = jax.block_until_ready(cbam_forward(x, w1, w2, wsp))
    ref = cbam_ref(x, w1, w2, wsp)

    assert out.shape == (B, C, H, W)
    np.testing.assert_allclose(np.asarray(out), np.asarray(ref), rtol=1e-4, atol=1e-5)
    print("KERNEL_OK")
</pallas_src>

<mosaic_0001>
module attributes {stable_mosaic.version = 11 : i64} {
  func.func @_cbam_fused_kernel(%arg0: i32, %arg1: memref<8x256xf32, #tpu.memory_space<vmem>>, %arg2: memref<4x1xf32, #tpu.memory_space<vmem>>, %arg3: memref<4x1xf32, #tpu.memory_space<vmem>>, %arg4: memref<49x4x256xf32, #tpu.memory_space<vmem>>, %arg5: memref<8x256xf32, #tpu.memory_space<vmem>>, %arg6: memref<8x1xf32, #tpu.memory_space<vmem>>, %arg7: memref<4x512xf32, #tpu.memory_space<vmem>>) attributes {dimension_semantics = [#tpu.dimension_semantics<parallel>], iteration_bounds = array<i64: 1>, scalar_prefetch = 0 : i64, scratch_operands = 2 : i64, tpu.core_type = #tpu.core_type<tc>, window_params = [{transform_indices = @transform_0, window_bounds = array<i64: 8, 256>}, {pipeline_mode = #tpu.pipeline_mode<synchronous>, transform_indices = @transform_1, window_bounds = array<i64: 4, 1>}, {pipeline_mode = #tpu.pipeline_mode<synchronous>, transform_indices = @transform_2, window_bounds = array<i64: 4, 1>}, {pipeline_mode = #tpu.pipeline_mode<synchronous>, transform_indices = @transform_3, window_bounds = array<i64: 49, 4, 256>}, {transform_indices = @transform_4, window_bounds = array<i64: 8, 256>}]} {
    %c0 = arith.constant 0 : index
    %c0_0 = arith.constant 0 : index
    %0 = vector.load %arg1[%c0, %c0_0] : memref<8x256xf32, #tpu.memory_space<vmem>>, vector<8x256xf32>
    %c0_1 = arith.constant 0 : index
    %c0_2 = arith.constant 0 : index
    %1 = vector.load %arg2[%c0_1, %c0_2] : memref<4x1xf32, #tpu.memory_space<vmem>>, vector<4x1xf32>
    %c0_3 = arith.constant 0 : index
    %c0_4 = arith.constant 0 : index
    %2 = vector.load %arg3[%c0_3, %c0_4] : memref<4x1xf32, #tpu.memory_space<vmem>>, vector<4x1xf32>
    %cst = arith.constant dense<0.000000e+00> : vector<8xf32>
    %3 = vector.multi_reduction <add>, %0, %cst [1] : vector<8x256xf32> to vector<8xf32>
    %4 = vector.shape_cast %3 : vector<8xf32> to vector<8x1xf32>
    %cst_5 = arith.constant 2.560000e+02 : f32
    %5 = vector.broadcast %cst_5 : f32 to vector<8x1xf32>
    %6 = arith.divf %4, %5 : vector<8x1xf32>
    %cst_6 = arith.constant dense<0xFF800000> : vector<8xf32>
    %7 = vector.multi_reduction <maximumf>, %0, %cst_6 [1] : vector<8x256xf32> to vector<8xf32>
    %8 = vector.shape_cast %7 : vector<8xf32> to vector<8x1xf32>
    %9 = vector.extract_strided_slice %6 {offsets = [0, 0], sizes = [4, 1], strides = [1, 1]} : vector<8x1xf32> to vector<4x1xf32>
    %10 = arith.mulf %1, %9 : vector<4x1xf32>
    %cst_7 = arith.constant dense<0.000000e+00> : vector<1xf32>
    %11 = vector.multi_reduction <add>, %10, %cst_7 [0] : vector<4x1xf32> to vector<1xf32>
    %12 = vector.shape_cast %11 : vector<1xf32> to vector<1x1xf32>
    %cst_8 = arith.constant 0.000000e+00 : f32
    %13 = vector.broadcast %cst_8 : f32 to vector<1x1xf32>
    %14 = arith.maximumf %12, %13 : vector<1x1xf32>
    %15 = vector.broadcast %14 : vector<1x1xf32> to vector<4x1xf32>
    %16 = arith.mulf %2, %15 : vector<4x1xf32>
    %cst_9 = arith.constant dense<0.000000e+00> : vector<4xf32>
    %17 = vector.multi_reduction <add>, %16, %cst_9 [1] : vector<4x1xf32> to vector<4xf32>
    %18 = vector.shape_cast %17 : vector<4xf32> to vector<4x1xf32>
    %19 = vector.extract_strided_slice %8 {offsets = [0, 0], sizes = [4, 1], strides = [1, 1]} : vector<8x1xf32> to vector<4x1xf32>
    %20 = arith.mulf %1, %19 : vector<4x1xf32>
    %cst_10 = arith.constant dense<0.000000e+00> : vector<1xf32>
    %21 = vector.multi_reduction <add>, %20, %cst_10 [0] : vector<4x1xf32> to vector<1xf32>
    %22 = vector.shape_cast %21 : vector<1xf32> to vector<1x1xf32>
    %cst_11 = arith.constant 0.000000e+00 : f32
    %23 = vector.broadcast %cst_11 : f32 to vector<1x1xf32>
    %24 = arith.maximumf %22, %23 : vector<1x1xf32>
    %25 = vector.broadcast %24 : vector<1x1xf32> to vector<4x1xf32>
    %26 = arith.mulf %2, %25 : vector<4x1xf32>
    %cst_12 = arith.constant dense<0.000000e+00> : vector<4xf32>
    %27 = vector.multi_reduction <add>, %26, %cst_12 [1] : vector<4x1xf32> to vector<4xf32>
    %28 = vector.shape_cast %27 : vector<4xf32> to vector<4x1xf32>
    %29 = arith.addf %18, %28 : vector<4x1xf32>
    %30 = arith.negf %29 : vector<4x1xf32>
    %31 = math.exp %30 : vector<4x1xf32>
    %cst_13 = arith.constant 1.000000e+00 : f32
    %32 = vector.broadcast %cst_13 : f32 to vector<4x1xf32>
    %33 = arith.addf %32, %31 : vector<4x1xf32>
    %34 = arith.divf %32, %33 : vector<4x1xf32>
    %c0_14 = arith.constant 0 : index
    %c0_15 = arith.constant 0 : index
    %35 = vector.load %arg6[%c0_14, %c0_15] : memref<8x1xf32, #tpu.memory_space<vmem>>, vector<4x1xf32>
    tpu.vector_store %arg6[%c0_14, %c0_15], %34 {strides = array<i32>} : memref<8x1xf32, #tpu.memory_space<vmem>>, vector<4x1xf32>,
    %36 = vector.extract_strided_slice %6 {offsets = [4, 0], sizes = [4, 1], strides = [1, 1]} : vector<8x1xf32> to vector<4x1xf32>
    %37 = arith.mulf %1, %36 : vector<4x1xf32>
    %cst_16 = arith.constant dense<0.000000e+00> : vector<1xf32>
    %38 = vector.multi_reduction <add>, %37, %cst_16 [0] : vector<4x1xf32> to vector<1xf32>
    %39 = vector.shape_cast %38 : vector<1xf32> to vector<1x1xf32>
    %cst_17 = arith.constant 0.000000e+00 : f32
    %40 = vector.broadcast %cst_17 : f32 to vector<1x1xf32>
    %41 = arith.maximumf %39, %40 : vector<1x1xf32>
    %42 = vector.broadcast %41 : vector<1x1xf32> to vector<4x1xf32>
    %43 = arith.mulf %2, %42 : vector<4x1xf32>
    %cst_18 = arith.constant dense<0.000000e+00> : vector<4xf32>
    %44 = vector.multi_reduction <add>, %43, %cst_18 [1] : vector<4x1xf32> to vector<4xf32>
    %45 = vector.shape_cast %44 : vector<4xf32> to vector<4x1xf32>
    %46 = vector.extract_strided_slice %8 {offsets = [4, 0], sizes = [4, 1], strides = [1, 1]} : vector<8x1xf32> to vector<4x1xf32>
    %47 = arith.mulf %1, %46 : vector<4x1xf32>
    %cst_19 = arith.constant dense<0.000000e+00> : vector<1xf32>
    %48 = vector.multi_reduction <add>, %47, %cst_19 [0] : vector<4x1xf32> to vector<1xf32>
    %49 = vector.shape_cast %48 : vector<1xf32> to vector<1x1xf32>
    %cst_20 = arith.constant 0.000000e+00 : f32
    %50 = vector.broadcast %cst_20 : f32 to vector<1x1xf32>
    %51 = arith.maximumf %49, %50 : vector<1x1xf32>
    %52 = vector.broadcast %51 : vector<1x1xf32> to vector<4x1xf32>
    %53 = arith.mulf %2, %52 : vector<4x1xf32>
    %cst_21 = arith.constant dense<0.000000e+00> : vector<4xf32>
    %54 = vector.multi_reduction <add>, %53, %cst_21 [1] : vector<4x1xf32> to vector<4xf32>
    %55 = vector.shape_cast %54 : vector<4xf32> to vector<4x1xf32>
    %56 = arith.addf %45, %55 : vector<4x1xf32>
    %57 = arith.negf %56 : vector<4x1xf32>
    %58 = math.exp %57 : vector<4x1xf32>
    %cst_22 = arith.constant 1.000000e+00 : f32
    %59 = vector.broadcast %cst_22 : f32 to vector<4x1xf32>
    %60 = arith.addf %59, %58 : vector<4x1xf32>
    %61 = arith.divf %59, %60 : vector<4x1xf32>
    %c4 = arith.constant 4 : index
    %c0_23 = arith.constant 0 : index
    %62 = vector.load %arg6[%c4, %c0_23] : memref<8x1xf32, #tpu.memory_space<vmem>>, vector<4x1xf32>
    tpu.vector_store %arg6[%c4, %c0_23], %61 {strides = array<i32>} : memref<8x1xf32, #tpu.memory_space<vmem>>, vector<4x1xf32>,
    %c0_24 = arith.constant 0 : index
    %c0_25 = arith.constant 0 : index
    %63 = vector.load %arg6[%c0_24, %c0_25] : memref<8x1xf32, #tpu.memory_space<vmem>>, vector<8x1xf32>
    %64 = vector.broadcast %63 : vector<8x1xf32> to vector<8x256xf32>
    %65 = arith.mulf %0, %64 : vector<8x256xf32>
    %66 = vector.extract_strided_slice %65 {offsets = [0, 0], sizes = [4, 256], strides = [1, 1]} : vector<8x256xf32> to vector<4x256xf32>
    %cst_26 = arith.constant dense<0.000000e+00> : vector<256xf32>
    %67 = vector.multi_reduction <add>, %66, %cst_26 [0] : vector<4x256xf32> to vector<256xf32>
    %68 = vector.shape_cast %67 : vector<256xf32> to vector<1x256xf32>
    %cst_27 = arith.constant 4.000000e+00 : f32
    %69 = vector.broadcast %cst_27 : f32 to vector<1x256xf32>
    %70 = arith.divf %68, %69 : vector<1x256xf32>
    %cst_28 = arith.constant dense<0xFF800000> : vector<256xf32>
    %71 = vector.multi_reduction <maximumf>, %66, %cst_28 [0] : vector<4x256xf32> to vector<256xf32>
    %72 = vector.shape_cast %71 : vector<256xf32> to vector<1x256xf32>
    %c0_29 = arith.constant 0 : index
    %c0_30 = arith.constant 0 : index
    %73 = vector.load %arg7[%c0_29, %c0_30] : memref<4x512xf32, #tpu.memory_space<vmem>>, vector<1x256xf32>
    tpu.vector_store %arg7[%c0_29, %c0_30], %70 {strides = array<i32>} : memref<4x512xf32, #tpu.memory_space<vmem>>, vector<1x256xf32>,
    %c0_31 = arith.constant 0 : index
    %c256 = arith.constant 256 : index
    %74 = vector.load %arg7[%c0_31, %c256] : memref<4x512xf32, #tpu.memory_space<vmem>>, vector<1x256xf32>
    tpu.vector_store %arg7[%c0_31, %c256], %70 {strides = array<i32>} : memref<4x512xf32, #tpu.memory_space<vmem>>, vector<1x256xf32>,
    %c2 = arith.constant 2 : index
    %c0_32 = arith.constant 0 : index
    %75 = vector.load %arg7[%c2, %c0_32] : memref<4x512xf32, #tpu.memory_space<vmem>>, vector<1x256xf32>
    tpu.vector_store %arg7[%c2, %c0_32], %72 {strides = array<i32>} : memref<4x512xf32, #tpu.memory_space<vmem>>, vector<1x256xf32>,
    %c2_33 = arith.constant 2 : index
    %c256_34 = arith.constant 256 : index
    %76 = vector.load %arg7[%c2_33, %c256_34] : memref<4x512xf32, #tpu.memory_space<vmem>>, vector<1x256xf32>
    tpu.vector_store %arg7[%c2_33, %c256_34], %72 {strides = array<i32>} : memref<4x512xf32, #tpu.memory_space<vmem>>, vector<1x256xf32>,
    %77 = vector.extract_strided_slice %65 {offsets = [4, 0], sizes = [4, 256], strides = [1, 1]} : vector<8x256xf32> to vector<4x256xf32>
    %cst_35 = arith.constant dense<0.000000e+00> : vector<256xf32>
    %78 = vector.multi_reduction <add>, %77, %cst_35 [0] : vector<4x256xf32> to vector<256xf32>
    %79 = vector.shape_cast %78 : vector<256xf32> to vector<1x256xf32>
    %cst_36 = arith.constant 4.000000e+00 : f32
    %80 = vector.broadcast %cst_36 : f32 to vector<1x256xf32>
    %81 = arith.divf %79, %80 : vector<1x256xf32>
    %cst_37 = arith.constant dense<0xFF800000> : vector<256xf32>
    %82 = vector.multi_reduction <maximumf>, %77, %cst_37 [0] : vector<4x256xf32> to vector<256xf32>
    %83 = vector.shape_cast %82 : vector<256xf32> to vector<1x256xf32>
    %c1 = arith.constant 1 : index
    %c0_38 = arith.constant 0 : index
    %84 = vector.load %arg7[%c1, %c0_38] : memref<4x512xf32, #tpu.memory_space<vmem>>, vector<1x256xf32>
    tpu.vector_store %arg7[%c1, %c0_38], %81 {strides = array<i32>} : memref<4x512xf32, #tpu.memory_space<vmem>>, vector<1x256xf32>,
    %c1_39 = arith.constant 1 : index
    %c256_40 = arith.constant 256 : index
    %85 = vector.load %arg7[%c1_39, %c256_40] : memref<4x512xf32, #tpu.memory_space<vmem>>, vector<1x256xf32>
    tpu.vector_store %arg7[%c1_39, %c256_40], %81 {strides = array<i32>} : memref<4x512xf32, #tpu.memory_space<vmem>>, vector<1x256xf32>,
    %c3 = arith.constant 3 : index
    %c0_41 = arith.constant 0 : index
    %86 = vector.load %arg7[%c3, %c0_41] : memref<4x512xf32, #tpu.memory_space<vmem>>, vector<1x256xf32>
    tpu.vector_store %arg7[%c3, %c0_41], %83 {strides = array<i32>} : memref<4x512xf32, #tpu.memory_space<vmem>>, vector<1x256xf32>,
    %c3_42 = arith.constant 3 : index
    %c256_43 = arith.constant 256 : index
    %87 = vector.load %arg7[%c3_42, %c256_43] : memref<4x512xf32, #tpu.memory_space<vmem>>, vector<1x256xf32>
    tpu.vector_store %arg7[%c3_42, %c256_43], %83 {strides = array<i32>} : memref<4x512xf32, #tpu.memory_space<vmem>>, vector<1x256xf32>,
    %cst_44 = arith.constant 0.000000e+00 : f32
    %88 = vector.broadcast %cst_44 : f32 to vector<4x256xf32>
    %cst_45 = arith.constant 0.000000e+00 : f32
    %89 = vector.broadcast %cst_45 : f32 to vector<4x256xf32>
    %cst_46 = arith.constant 0.000000e+00 : f32
    %90 = vector.broadcast %cst_46 : f32 to vector<4x256xf32>
    %cst_47 = arith.constant 0.000000e+00 : f32
    %91 = vector.broadcast %cst_47 : f32 to vector<4x256xf32>
    %c0_48 = arith.constant 0 : index
    %c205 = arith.constant 205 : index
    %92 = vector.load %arg7[%c0_48, %c205] : memref<4x512xf32, #tpu.memory_space<vmem>>, vector<4x256xf32>
    %c0_49 = arith.constant 0 : index
    %c0_50 = arith.constant 0 : index
    %c0_51 = arith.constant 0 : index
    %93 = vector.load %arg4[%c0_49, %c0_50, %c0_51] : memref<49x4x256xf32, #tpu.memory_space<vmem>>, vector<1x4x256xf32>
    %94 = vector.shape_cast %93 : vector<1x4x256xf32> to vector<4x256xf32>
    %95 = arith.mulf %92, %94 : vector<4x256xf32>
    %96 = arith.addf %88, %95 : vector<4x256xf32>
    %c0_52 = arith.constant 0 : index
    %c206 = arith.constant 206 : index
    %97 = vector.load %arg7[%c0_52, %c206] : memref<4x512xf32, #tpu.memory_space<vmem>>, vector<4x256xf32>
    %c1_53 = arith.constant 1 : index
    %c0_54 = arith.constant 0 : index
    %c0_55 = arith.constant 0 : index
    %98 = vector.load %arg4[%c1_53, %c0_54, %c0_55] : memref<49x4x256xf32, #tpu.memory_space<vmem>>, vector<1x4x256xf32>
    %99 = vector.shape_cast %98 : vector<1x4x256xf32> to vector<4x256xf32>
    %100 = arith.mulf %97, %99 : vector<4x256xf32>
    %101 = arith.addf %89, %100 : vector<4x256xf32>
    %c0_56 = arith.constant 0 : index
    %c207 = arith.constant 207 : index
    %102 = vector.load %arg7[%c0_56, %c207] : memref<4x512xf32, #tpu.memory_space<vmem>>, vector<4x256xf32>
    %c2_57 = arith.constant 2 : index
    %c0_58 = arith.constant 0 : index
    %c0_59 = arith.constant 0 : index
    %103 = vector.load %arg4[%c2_57, %c0_58, %c0_59] : memref<49x4x256xf32, #tpu.memory_space<vmem>>, vector<1x4x256xf32>
    %104 = vector.shape_cast %103 : vector<1x4x256xf32> to vector<4x256xf32>
    %105 = arith.mulf %102, %104 : vector<4x256xf32>
    %106 = arith.addf %90, %105 : vector<4x256xf32>
    %c0_60 = arith.constant 0 : index
    %c208 = arith.constant 208 : index
    %107 = vector.load %arg7[%c0_60, %c208] : memref<4x512xf32, #tpu.memory_space<vmem>>, vector<4x256xf32>
    %c3_61 = arith.constant 3 : index
    %c0_62 = arith.constant 0 : index
    %c0_63 = arith.constant 0 : index
    %108 = vector.load %arg4[%c3_61, %c0_62, %c0_63] : memref<49x4x256xf32, #tpu.memory_space<vmem>>, vector<1x4x256xf32>
    %109 = vector.shape_cast %108 : vector<1x4x256xf32> to vector<4x256xf32>
    %110 = arith.mulf %107, %109 : vector<4x256xf32>
    %111 = arith.addf %91, %110 : vector<4x256xf32>
    %c0_64 = arith.constant 0 : index
    %c209 = arith.constant 209 : index
    %112 = vector.load %arg7[%c0_64, %c209] : memref<4x512xf32, #tpu.memory_space<vmem>>, vector<4x256xf32>
    %c4_65 = arith.constant 4 : index
    %c0_66 = arith.constant 0 : index
    %c0_67 = arith.constant 0 : index
    %113 = vector.load %arg4[%c4_65, %c0_66, %c0_67] : memref<49x4x256xf32, #tpu.memory_space<vmem>>, vector<1x4x256xf32>
    %114 = vector.shape_cast %113 : vector<1x4x256xf32> to vector<4x256xf32>
    %115 = arith.mulf %112, %114 : vector<4x256xf32>
    %116 = arith.addf %96, %115 : vector<4x256xf32>
    %c0_68 = arith.constant 0 : index
    %c210 = arith.constant 210 : index
    %117 = vector.load %arg7[%c0_68, %c210] : memref<4x512xf32, #tpu.memory_space<vmem>>, vector<4x256xf32>
    %c5 = arith.constant 5 : index
    %c0_69 = arith.constant 0 : index
    %c0_70 = arith.constant 0 : index
    %118 = vector.load %arg4[%c5, %c0_69, %c0_70] : memref<49x4x256xf32, #tpu.memory_space<vmem>>, vector<1x4x256xf32>
    %119 = vector.shape_cast %118 : vector<1x4x256xf32> to vector<4x256xf32>
    %120 = arith.mulf %117, %119 : vector<4x256xf32>
    %121 = arith.addf %101, %120 : vector<4x256xf32>
    %c0_71 = arith.constant 0 : index
    %c211 = arith.constant 211 : index
    %122 = vector.load %arg7[%c0_71, %c211] : memref<4x512xf32, #tpu.memory_space<vmem>>, vector<4x256xf32>
    %c6 = arith.constant 6 : index
    %c0_72 = arith.constant 0 : index
    %c0_73 = arith.constant 0 : index
    %123 = vector.load %arg4[%c6, %c0_72, %c0_73] : memref<49x4x256xf32, #tpu.memory_space<vmem>>, vector<1x4x256xf32>
    %124 = vector.shape_cast %123 : vector<1x4x256xf32> to vector<4x256xf32>
    %125 = arith.mulf %122, %124 : vector<4x256xf32>
    %126 = arith.addf %106, %125 : vector<4x256xf32>
    %c0_74 = arith.constant 0 : index
    %c221 = arith.constant 221 : index
    %127 = vector.load %arg7[%c0_74, %c221] : memref<4x512xf32, #tpu.memory_space<vmem>>, vector<4x256xf32>
    %c7 = arith.constant 7 : index
    %c0_75 = arith.constant 0 : index
    %c0_76 = arith.constant 0 : index
    %128 = vector.load %arg4[%c7, %c0_75, %c0_76] : memref<49x4x256xf32, #tpu.memory_space<vmem>>, vector<1x4x256xf32>
    %129 = vector.shape_cast %128 : vector<1x4x256xf32> to vector<4x256xf32>
    %130 = arith.mulf %127, %129 : vector<4x256xf32>
    %131 = arith.addf %111, %130 : vector<4x256xf32>
    %c0_77 = arith.constant 0 : index
    %c222 = arith.constant 222 : index
    %132 = vector.load %arg7[%c0_77, %c222] : memref<4x512xf32, #tpu.memory_space<vmem>>, vector<4x256xf32>
    %c8 = arith.constant 8 : index
    %c0_78 = arith.constant 0 : index
    %c0_79 = arith.constant 0 : index
    %133 = vector.load %arg4[%c8, %c0_78, %c0_79] : memref<49x4x256xf32, #tpu.memory_space<vmem>>, vector<1x4x256xf32>
    %134 = vector.shape_cast %133 : vector<1x4x256xf32> to vector<4x256xf32>
    %135 = arith.mulf %132, %134 : vector<4x256xf32>
    %136 = arith.addf %116, %135 : vector<4x256xf32>
    %c0_80 = arith.constant 0 : index
    %c223 = arith.constant 223 : index
    %137 = vector.load %arg7[%c0_80, %c223] : memref<4x512xf32, #tpu.memory_space<vmem>>, vector<4x256xf32>
    %c9 = arith.constant 9 : index
    %c0_81 = arith.constant 0 : index
    %c0_82 = arith.constant 0 : index
    %138 = vector.load %arg4[%c9, %c0_81, %c0_82] : memref<49x4x256xf32, #tpu.memory_space<vmem>>, vector<1x4x256xf32>
    %139 = vector.shape_cast %138 : vector<1x4x256xf32> to vector<4x256xf32>
    %140 = arith.mulf %137, %139 : vector<4x256xf32>
    %141 = arith.addf %121, %140 : vector<4x256xf32>
    %c0_83 = arith.constant 0 : index
    %c224 = arith.constant 224 : index
    %142 = vector.load %arg7[%c0_83, %c224] : memref<4x512xf32, #tpu.memory_space<vmem>>, vector<4x256xf32>
    %c10 = arith.constant 10 : index
    %c0_84 = arith.constant 0 : index
    %c0_85 = arith.constant 0 : index
    %143 = vector.load %arg4[%c10, %c0_84, %c0_85] : memref<49x4x256xf32, #tpu.memory_space<vmem>>, vector<1x4x256xf32>
    %144 = vector.shape_cast %143 : vector<1x4x256xf32> to vector<4x256xf32>
    %145 = arith.mulf %142, %144 : vector<4x256xf32>
    %146 = arith.addf %126, %145 : vector<4x256xf32>
    %c0_86 = arith.constant 0 : index
    %c225 = arith.constant 225 : index
    %147 = vector.load %arg7[%c0_86, %c225] : memref<4x512xf32, #tpu.memory_space<vmem>>, vector<4x256xf32>
    %c11 = arith.constant 11 : index
    %c0_87 = arith.constant 0 : index
    %c0_88 = arith.constant 0 : index
    %148 = vector.load %arg4[%c11, %c0_87, %c0_88] : memref<49x4x256xf32, #tpu.memory_space<vmem>>, vector<1x4x256xf32>
    %149 = vector.shape_cast %148 : vector<1x4x256xf32> to vector<4x256xf32>
    %150 = arith.mulf %147, %149 : vector<4x256xf32>
    %151 = arith.addf %131, %150 : vector<4x256xf32>
    %c0_89 = arith.constant 0 : index
    %c226 = arith.constant 226 : index
    %152 = vector.load %arg7[%c0_89, %c226] : memref<4x512xf32, #tpu.memory_space<vmem>>, vector<4x256xf32>
    %c12 = arith.constant 12 : index
    %c0_90 = arith.constant 0 : index
    %c0_91 = arith.constant 0 : index
    %153 = vector.load %arg4[%c12, %c0_90, %c0_91] : memref<49x4x256xf32, #tpu.memory_space<vmem>>, vector<1x4x256xf32>
    %154 = vector.shape_cast %153 : vector<1x4x256xf32> to vector<4x256xf32>
    %155 = arith.mulf %152, %154 : vector<4x256xf32>
    %156 = arith.addf %136, %155 : vector<4x256xf32>
    %c0_92 = arith.constant 0 : index
    %c227 = arith.constant 227 : index
    %157 = vector.load %arg7[%c0_92, %c227] : memref<4x512xf32, #tpu.memory_space<vmem>>, vector<4x256xf32>
    %c13 = arith.constant 13 : index
    %c0_93 = arith.constant 0 : index
    %c0_94 = arith.constant 0 : index
    %158 = vector.load %arg4[%c13, %c0_93, %c0_94] : memref<49x4x256xf32, #tpu.memory_space<vmem>>, vector<1x4x256xf32>
    %159 = vector.shape_cast %158 : vector<1x4x256xf32> to vector<4x256xf32>
    %160 = arith.mulf %157, %159 : vector<4x256xf32>
    %161 = arith.addf %141, %160 : vector<4x256xf32>
    %c0_95 = arith.constant 0 : index
    %c237 = arith.constant 237 : index
    %162 = vector.load %arg7[%c0_95, %c237] : memref<4x512xf32, #tpu.memory_space<vmem>>, vector<4x256xf32>
    %c14 = arith.constant 14 : index
    %c0_96 = arith.constant 0 : index
    %c0_97 = arith.constant 0 : index
    %163 = vector.load %arg4[%c14, %c0_96, %c0_97] : memref<49x4x256xf32, #tpu.memory_space<vmem>>, vector<1x4x256xf32>
    %164 = vector.shape_cast %163 : vector<1x4x256xf32> to vector<4x256xf32>
    %165 = arith.mulf %162, %164 : vector<4x256xf32>
    %166 = arith.addf %146, %165 : vector<4x256xf32>
    %c0_98 = arith.constant 0 : index
    %c238 = arith.constant 238 : index
    %167 = vector.load %arg7[%c0_98, %c238] : memref<4x512xf32, #tpu.memory_space<vmem>>, vector<4x256xf32>
    %c15 = arith.constant 15 : index
    %c0_99 = arith.constant 0 : index
    %c0_100 = arith.constant 0 : index
    %168 = vector.load %arg4[%c15, %c0_99, %c0_100] : memref<49x4x256xf32, #tpu.memory_space<vmem>>, vector<1x4x256xf32>
    %169 = vector.shape_cast %168 : vector<1x4x256xf32> to vector<4x256xf32>
    %170 = arith.mulf %167, %169 : vector<4x256xf32>
    %171 = arith.addf %151, %170 : vector<4x256xf32>
    %c0_101 = arith.constant 0 : index
    %c239 = arith.constant 239 : index
    %172 = vector.load %arg7[%c0_101, %c239] : memref<4x512xf32, #tpu.memory_space<vmem>>, vector<4x256xf32>
    %c16 = arith.constant 16 : index
    %c0_102 = arith.constant 0 : index
    %c0_103 = arith.constant 0 : index
    %173 = vector.load %arg4[%c16, %c0_102, %c0_103] : memref<49x4x256xf32, #tpu.memory_space<vmem>>, vector<1x4x256xf32>
    %174 = vector.shape_cast %173 : vector<1x4x256xf32> to vector<4x256xf32>
    %175 = arith.mulf %172, %174 : vector<4x256xf32>
    %176 = arith.addf %156, %175 : vector<4x256xf32>
    %c0_104 = arith.constant 0 : index
    %c240 = arith.constant 240 : index
    %177 = vector.load %arg7[%c0_104, %c240] : memref<4x512xf32, #tpu.memory_space<vmem>>, vector<4x256xf32>
    %c17 = arith.constant 17 : index
    %c0_105 = arith.constant 0 : index
    %c0_106 = arith.constant 0 : index
    %178 = vector.load %arg4[%c17, %c0_105, %c0_106] : memref<49x4x256xf32, #tpu.memory_space<vmem>>, vector<1x4x256xf32>
    %179 = vector.shape_cast %178 : vector<1x4x256xf32> to vector<4x256xf32>
    %180 = arith.mulf %177, %179 : vector<4x256xf32>
    %181 = arith.addf %161, %180 : vector<4x256xf32>
    %c0_107 = arith.constant 0 : index
    %c241 = arith.constant 241 : index
    %182 = vector.load %arg7[%c0_107, %c241] : memref<4x512xf32, #tpu.memory_space<vmem>>, vector<4x256xf32>
    %c18 = arith.constant 18 : index
    %c0_108 = arith.constant 0 : index
    %c0_109 = arith.constant 0 : index
    %183 = vector.load %arg4[%c18, %c0_108, %c0_109] : memref<49x4x256xf32, #tpu.memory_space<vmem>>, vector<1x4x256xf32>
    %184 = vector.shape_cast %183 : vector<1x4x256xf32> to vector<4x256xf32>
    %185 = arith.mulf %182, %184 : vector<4x256xf32>
    %186 = arith.addf %166, %185 : vector<4x256xf32>
    %c0_110 = arith.constant 0 : index
    %c242 = arith.constant 242 : index
    %187 = vector.load %arg7[%c0_110, %c242] : memref<4x512xf32, #tpu.memory_space<vmem>>, vector<4x256xf32>
    %c19 = arith.constant 19 : index
    %c0_111 = arith.constant 0 : index
    %c0_112 = arith.constant 0 : index
    %188 = vector.load %arg4[%c19, %c0_111, %c0_112] : memref<49x4x256xf32, #tpu.memory_space<vmem>>, vector<1x4x256xf32>
    %189 = vector.shape_cast %188 : vector<1x4x256xf32> to vector<4x256xf32>
    %190 = arith.mulf %187, %189 : vector<4x256xf32>
    %191 = arith.addf %171, %190 : vector<4x256xf32>
    %c0_113 = arith.constant 0 : index
    %c243 = arith.constant 243 : index
    %192 = vector.load %arg7[%c0_113, %c243] : memref<4x512xf32, #tpu.memory_space<vmem>>, vector<4x256xf32>
    %c20 = arith.constant 20 : index
    %c0_114 = arith.constant 0 : index
    %c0_115 = arith.constant 0 : index
    %193 = vector.load %arg4[%c20, %c0_114, %c0_115] : memref<49x4x256xf32, #tpu.memory_space<vmem>>, vector<1x4x256xf32>
    %194 = vector.shape_cast %193 : vector<1x4x256xf32> to vector<4x256xf32>
    %195 = arith.mulf %192, %194 : vector<4x256xf32>
    %196 = arith.addf %176, %195 : vector<4x256xf32>
    %c0_116 = arith.constant 0 : index
    %c253 = arith.constant 253 : index
    %197 = vector.load %arg7[%c0_116, %c253] : memref<4x512xf32, #tpu.memory_space<vmem>>, vector<4x256xf32>
    %c21 = arith.constant 21 : index
    %c0_117 = arith.constant 0 : index
    %c0_118 = arith.constant 0 : index
    %198 = vector.load %arg4[%c21, %c0_117, %c0_118] : memref<49x4x256xf32, #tpu.memory_space<vmem>>, vector<1x4x256xf32>
    %199 = vector.shape_cast %198 : vector<1x4x256xf32> to vector<4x256xf32>
    %200 = arith.mulf %197, %199 : vector<4x256xf32>
    %201 = arith.addf %181, %200 : vector<4x256xf32>
    %c0_119 = arith.constant 0 : index
    %c254 = arith.constant 254 : index
    %202 = vector.load %arg7[%c0_119, %c254] : memref<4x512xf32, #tpu.memory_space<vmem>>, vector<4x256xf32>
    %c22 = arith.constant 22 : index
    %c0_120 = arith.constant 0 : index
    %c0_121 = arith.constant 0 : index
    %203 = vector.load %arg4[%c22, %c0_120, %c0_121] : memref<49x4x256xf32, #tpu.memory_space<vmem>>, vector<1x4x256xf32>
    %204 = vector.shape_cast %203 : vector<1x4x256xf32> to vector<4x256xf32>
    %205 = arith.mulf %202, %204 : vector<4x256xf32>
    %206 = arith.addf %186, %205 : vector<4x256xf32>
    %c0_122 = arith.constant 0 : index
    %c255 = arith.constant 255 : index
    %207 = vector.load %arg7[%c0_122, %c255] : memref<4x512xf32, #tpu.memory_space<vmem>>, vector<4x256xf32>
    %c23 = arith.constant 23 : index
    %c0_123 = arith.constant 0 : index
    %c0_124 = arith.constant 0 : index
    %208 = vector.load %arg4[%c23, %c0_123, %c0_124] : memref<49x4x256xf32, #tpu.memory_space<vmem>>, vector<1x4x256xf32>
    %209 = vector.shape_cast %208 : vector<1x4x256xf32> to vector<4x256xf32>
    %210 = arith.mulf %207, %209 : vector<4x256xf32>
    %211 = arith.addf %191, %210 : vector<4x256xf32>
    %c0_125 = arith.constant 0 : index
    %c0_126 = arith.constant 0 : index
    %212 = vector.load %arg7[%c0_125, %c0_126] : memref<4x512xf32, #tpu.memory_space<vmem>>, vector<4x256xf32>
    %c24 = arith.constant 24 : index
    %c0_127 = arith.constant 0 : index
    %c0_128 = arith.constant 0 : index
    %213 = vector.load %arg4[%c24, %c0_127, %c0_128] : memref<49x4x256xf32, #tpu.memory_space<vmem>>, vector<1x4x256xf32>
    %214 = vector.shape_cast %213 : vector<1x4x256xf32> to vector<4x256xf32>
    %215 = arith.mulf %212, %214 : vector<4x256xf32>
    %216 = arith.addf %196, %215 : vector<4x256xf32>
    %c0_129 = arith.constant 0 : index
    %c1_130 = arith.constant 1 : index
    %217 = vector.load %arg7[%c0_129, %c1_130] : memref<4x512xf32, #tpu.memory_space<vmem>>, vector<4x256xf32>
    %c25 = arith.constant 25 : index
    %c0_131 = arith.constant 0 : index
    %c0_132 = arith.constant 0 : index
    %218 = vector.load %arg4[%c25, %c0_131, %c0_132] : memref<49x4x256xf32, #tpu.memory_space<vmem>>, vector<1x4x256xf32>
    %219 = vector.shape_cast %218 : vector<1x4x256xf32> to vector<4x256xf32>
    %220 = arith.mulf %217, %219 : vector<4x256xf32>
    %221 = arith.addf %201, %220 : vector<4x256xf32>
    %c0_133 = arith.constant 0 : index
    %c2_134 = arith.constant 2 : index
    %222 = vector.load %arg7[%c0_133, %c2_134] : memref<4x512xf32, #tpu.memory_space<vmem>>, vector<4x256xf32>
    %c26 = arith.constant 26 : index
    %c0_135 = arith.constant 0 : index
    %c0_136 = arith.constant 0 : index
    %223 = vector.load %arg4[%c26, %c0_135, %c0_136] : memref<49x4x256xf32, #tpu.memory_space<vmem>>, vector<1x4x256xf32>
    %224 = vector.shape_cast %223 : vector<1x4x256xf32> to vector<4x256xf32>
    %225 = arith.mulf %222, %224 : vector<4x256xf32>
    %226 = arith.addf %206, %225 : vector<4x256xf32>
    %c0_137 = arith.constant 0 : index
    %c3_138 = arith.constant 3 : index
    %227 = vector.load %arg7[%c0_137, %c3_138] : memref<4x512xf32, #tpu.memory_space<vmem>>, vector<4x256xf32>
    %c27 = arith.constant 27 : index
    %c0_139 = arith.constant 0 : index
    %c0_140 = arith.constant 0 : index
    %228 = vector.load %arg4[%c27, %c0_139, %c0_140] : memref<49x4x256xf32, #tpu.memory_space<vmem>>, vector<1x4x256xf32>
    %229 = vector.shape_cast %228 : vector<1x4x256xf32> to vector<4x256xf32>
    %230 = arith.mulf %227, %229 : vector<4x256xf32>
    %231 = arith.addf %211, %230 : vector<4x256xf32>
    %c0_141 = arith.constant 0 : index
    %c13_142 = arith.constant 13 : index
    %232 = vector.load %arg7[%c0_141, %c13_142] : memref<4x512xf32, #tpu.memory_space<vmem>>, vector<4x256xf32>
    %c28 = arith.constant 28 : index
    %c0_143 = arith.constant 0 : index
    %c0_144 = arith.constant 0 : index
    %233 = vector.load %arg4[%c28, %c0_143, %c0_144] : memref<49x4x256xf32, #tpu.memory_space<vmem>>, vector<1x4x256xf32>
    %234 = vector.shape_cast %233 : vector<1x4x256xf32> to vector<4x256xf32>
    %235 = arith.mulf %232, %234 : vector<4x256xf32>
    %236 = arith.addf %216, %235 : vector<4x256xf32>
    %c0_145 = arith.constant 0 : index
    %c14_146 = arith.constant 14 : index
    %237 = vector.load %arg7[%c0_145, %c14_146] : memref<4x512xf32, #tpu.memory_space<vmem>>, vector<4x256xf32>
    %c29 = arith.constant 29 : index
    %c0_147 = arith.constant 0 : index
    %c0_148 = arith.constant 0 : index
    %238 = vector.load %arg4[%c29, %c0_147, %c0_148] : memref<49x4x256xf32, #tpu.memory_space<vmem>>, vector<1x4x256xf32>
    %239 = vector.shape_cast %238 : vector<1x4x256xf32> to vector<4x256xf32>
    %240 = arith.mulf %237, %239 : vector<4x256xf32>
    %241 = arith.addf %221, %240 : vector<4x256xf32>
    %c0_149 = arith.constant 0 : index
    %c15_150 = arith.constant 15 : index
    %242 = vector.load %arg7[%c0_149, %c15_150] : memref<4x512xf32, #tpu.memory_space<vmem>>, vector<4x256xf32>
    %c30 = arith.constant 30 : index
    %c0_151 = arith.constant 0 : index
    %c0_152 = arith.constant 0 : index
    %243 = vector.load %arg4[%c30, %c0_151, %c0_152] : memref<49x4x256xf32, #tpu.memory_space<vmem>>, vector<1x4x256xf32>
    %244 = vector.shape_cast %243 : vector<1x4x256xf32> to vector<4x256xf32>
    %245 = arith.mulf %242, %244 : vector<4x256xf32>
    %246 = arith.addf %226, %245 : vector<4x256xf32>
    %c0_153 = arith.constant 0 : index
    %c16_154 = arith.constant 16 : index
    %247 = vector.load %arg7[%c0_153, %c16_154] : memref<4x512xf32, #tpu.memory_space<vmem>>, vector<4x256xf32>
    %c31 = arith.constant 31 : index
    %c0_155 = arith.constant 0 : index
    %c0_156 = arith.constant 0 : index
    %248 = vector.load %arg4[%c31, %c0_155, %c0_156] : memref<49x4x256xf32, #tpu.memory_space<vmem>>, vector<1x4x256xf32>
    %249 = vector.shape_cast %248 : vector<1x4x256xf32> to vector<4x256xf32>
    %250 = arith.mulf %247, %249 : vector<4x256xf32>
    %251 = arith.addf %231, %250 : vector<4x256xf32>
    %c0_157 = arith.constant 0 : index
    %c17_158 = arith.constant 17 : index
    %252 = vector.load %arg7[%c0_157, %c17_158] : memref<4x512xf32, #tpu.memory_space<vmem>>, vector<4x256xf32>
    %c32 = arith.constant 32 : index
    %c0_159 = arith.constant 0 : index
    %c0_160 = arith.constant 0 : index
    %253 = vector.load %arg4[%c32, %c0_159, %c0_160] : memref<49x4x256xf32, #tpu.memory_space<vmem>>, vector<1x4x256xf32>
    %254 = vector.shape_cast %253 : vector<1x4x256xf32> to vector<4x256xf32>
    %255 = arith.mulf %252, %254 : vector<4x256xf32>
    %256 = arith.addf %236, %255 : vector<4x256xf32>
    %c0_161 = arith.constant 0 : index
    %c18_162 = arith.constant 18 : index
    %257 = vector.load %arg7[%c0_161, %c18_162] : memref<4x512xf32, #tpu.memory_space<vmem>>, vector<4x256xf32>
    %c33 = arith.constant 33 : index
    %c0_163 = arith.constant 0 : index
    %c0_164 = arith.constant 0 : index
    %258 = vector.load %arg4[%c33, %c0_163, %c0_164] : memref<49x4x256xf32, #tpu.memory_space<vmem>>, vector<1x4x256xf32>
    %259 = vector.shape_cast %258 : vector<1x4x256xf32> to vector<4x256xf32>
    %260 = arith.mulf %257, %259 : vector<4x256xf32>
    %261 = arith.addf %241, %260 : vector<4x256xf32>
    %c0_165 = arith.constant 0 : index
    %c19_166 = arith.constant 19 : index
    %262 = vector.load %arg7[%c0_165, %c19_166] : memref<4x512xf32, #tpu.memory_space<vmem>>, vector<4x256xf32>
    %c34 = arith.constant 34 : index
    %c0_167 = arith.constant 0 : index
    %c0_168 = arith.constant 0 : index
    %263 = vector.load %arg4[%c34, %c0_167, %c0_168] : memref<49x4x256xf32, #tpu.memory_space<vmem>>, vector<1x4x256xf32>
    %264 = vector.shape_cast %263 : vector<1x4x256xf32> to vector<4x256xf32>
    %265 = arith.mulf %262, %264 : vector<4x256xf32>
    %266 = arith.addf %246, %265 : vector<4x256xf32>
    %c0_169 = arith.constant 0 : index
    %c29_170 = arith.constant 29 : index
    %267 = vector.load %arg7[%c0_169, %c29_170] : memref<4x512xf32, #tpu.memory_space<vmem>>, vector<4x256xf32>
    %c35 = arith.constant 35 : index
    %c0_171 = arith.constant 0 : index
    %c0_172 = arith.constant 0 : index
    %268 = vector.load %arg4[%c35, %c0_171, %c0_172] : memref<49x4x256xf32, #tpu.memory_space<vmem>>, vector<1x4x256xf32>
    %269 = vector.shape_cast %268 : vector<1x4x256xf32> to vector<4x256xf32>
    %270 = arith.mulf %267, %269 : vector<4x256xf32>
    %271 = arith.addf %251, %270 : vector<4x256xf32>
    %c0_173 = arith.constant 0 : index
    %c30_174 = arith.constant 30 : index
    %272 = vector.load %arg7[%c0_173, %c30_174] : memref<4x512xf32, #tpu.memory_space<vmem>>, vector<4x256xf32>
    %c36 = arith.constant 36 : index
    %c0_175 = arith.constant 0 : index
    %c0_176 = arith.constant 0 : index
    %273 = vector.load %arg4[%c36, %c0_175, %c0_176] : memref<49x4x256xf32, #tpu.memory_space<vmem>>, vector<1x4x256xf32>
    %274 = vector.shape_cast %273 : vector<1x4x256xf32> to vector<4x256xf32>
    %275 = arith.mulf %272, %274 : vector<4x256xf32>
    %276 = arith.addf %256, %275 : vector<4x256xf32>
    %c0_177 = arith.constant 0 : index
    %c31_178 = arith.constant 31 : index
    %277 = vector.load %arg7[%c0_177, %c31_178] : memref<4x512xf32, #tpu.memory_space<vmem>>, vector<4x256xf32>
    %c37 = arith.constant 37 : index
    %c0_179 = arith.constant 0 : index
    %c0_180 = arith.constant 0 : index
    %278 = vector.load %arg4[%c37, %c0_179, %c0_180] : memref<49x4x256xf32, #tpu.memory_space<vmem>>, vector<1x4x256xf32>
    %279 = vector.shape_cast %278 : vector<1x4x256xf32> to vector<4x256xf32>
    %280 = arith.mulf %277, %279 : vector<4x256xf32>
    %281 = arith.addf %261, %280 : vector<4x256xf32>
    %c0_181 = arith.constant 0 : index
    %c32_182 = arith.constant 32 : index
    %282 = vector.load %arg7[%c0_181, %c32_182] : memref<4x512xf32, #tpu.memory_space<vmem>>, vector<4x256xf32>
    %c38 = arith.constant 38 : index
    %c0_183 = arith.constant 0 : index
    %c0_184 = arith.constant 0 : index
    %283 = vector.load %arg4[%c38, %c0_183, %c0_184] : memref<49x4x256xf32, #tpu.memory_space<vmem>>, vector<1x4x256xf32>
    %284 = vector.shape_cast %283 : vector<1x4x256xf32> to vector<4x256xf32>
    %285 = arith.mulf %282, %284 : vector<4x256xf32>
    %286 = arith.addf %266, %285 : vector<4x256xf32>
    %c0_185 = arith.constant 0 : index
    %c33_186 = arith.constant 33 : index
    %287 = vector.load %arg7[%c0_185, %c33_186] : memref<4x512xf32, #tpu.memory_space<vmem>>, vector<4x256xf32>
    %c39 = arith.constant 39 : index
    %c0_187 = arith.constant 0 : index
    %c0_188 = arith.constant 0 : index
    %288 = vector.load %arg4[%c39, %c0_187, %c0_188] : memref<49x4x256xf32, #tpu.memory_space<vmem>>, vector<1x4x256xf32>
    %289 = vector.shape_cast %288 : vector<1x4x256xf32> to vector<4x256xf32>
    %290 = arith.mulf %287, %289 : vector<4x256xf32>
    %291 = arith.addf %271, %290 : vector<4x256xf32>
    %c0_189 = arith.constant 0 : index
    %c34_190 = arith.constant 34 : index
    %292 = vector.load %arg7[%c0_189, %c34_190] : memref<4x512xf32, #tpu.memory_space<vmem>>, vector<4x256xf32>
    %c40 = arith.constant 40 : index
    %c0_191 = arith.constant 0 : index
    %c0_192 = arith.constant 0 : index
    %293 = vector.load %arg4[%c40, %c0_191, %c0_192] : memref<49x4x256xf32, #tpu.memory_space<vmem>>, vector<1x4x256xf32>
    %294 = vector.shape_cast %293 : vector<1x4x256xf32> to vector<4x256xf32>
    %295 = arith.mulf %292, %294 : vector<4x256xf32>
    %296 = arith.addf %276, %295 : vector<4x256xf32>
    %c0_193 = arith.constant 0 : index
    %c35_194 = arith.constant 35 : index
    %297 = vector.load %arg7[%c0_193, %c35_194] : memref<4x512xf32, #tpu.memory_space<vmem>>, vector<4x256xf32>
    %c41 = arith.constant 41 : index
    %c0_195 = arith.constant 0 : index
    %c0_196 = arith.constant 0 : index
    %298 = vector.load %arg4[%c41, %c0_195, %c0_196] : memref<49x4x256xf32, #tpu.memory_space<vmem>>, vector<1x4x256xf32>
    %299 = vector.shape_cast %298 : vector<1x4x256xf32> to vector<4x256xf32>
    %300 = arith.mulf %297, %299 : vector<4x256xf32>
    %301 = arith.addf %281, %300 : vector<4x256xf32>
    %c0_197 = arith.constant 0 : index
    %c45 = arith.constant 45 : index
    %302 = vector.load %arg7[%c0_197, %c45] : memref<4x512xf32, #tpu.memory_space<vmem>>, vector<4x256xf32>
    %c42 = arith.constant 42 : index
    %c0_198 = arith.constant 0 : index
    %c0_199 = arith.constant 0 : index
    %303 = vector.load %arg4[%c42, %c0_198, %c0_199] : memref<49x4x256xf32, #tpu.memory_space<vmem>>, vector<1x4x256xf32>
    %304 = vector.shape_cast %303 : vector<1x4x256xf32> to vector<4x256xf32>
    %305 = arith.mulf %302, %304 : vector<4x256xf32>
    %306 = arith.addf %286, %305 : vector<4x256xf32>
    %c0_200 = arith.constant 0 : index
    %c46 = arith.constant 46 : index
    %307 = vector.load %arg7[%c0_200, %c46] : memref<4x512xf32, #tpu.memory_space<vmem>>, vector<4x256xf32>
    %c43 = arith.constant 43 : index
    %c0_201 = arith.constant 0 : index
    %c0_202 = arith.constant 0 : index
    %308 = vector.load %arg4[%c43, %c0_201, %c0_202] : memref<49x4x256xf32, #tpu.memory_space<vmem>>, vector<1x4x256xf32>
    %309 = vector.shape_cast %308 : vector<1x4x256xf32> to vector<4x256xf32>
    %310 = arith.mulf %307, %309 : vector<4x256xf32>
    %311 = arith.addf %291, %310 : vector<4x256xf32>
    %c0_203 = arith.constant 0 : index
    %c47 = arith.constant 47 : index
    %312 = vector.load %arg7[%c0_203, %c47] : memref<4x512xf32, #tpu.memory_space<vmem>>, vector<4x256xf32>
    %c44 = arith.constant 44 : index
    %c0_204 = arith.constant 0 : index
    %c0_205 = arith.constant 0 : index
    %313 = vector.load %arg4[%c44, %c0_204, %c0_205] : memref<49x4x256xf32, #tpu.memory_space<vmem>>, vector<1x4x256xf32>
    %314 = vector.shape_cast %313 : vector<1x4x256xf32> to vector<4x256xf32>
    %315 = arith.mulf %312, %314 : vector<4x256xf32>
    %316 = arith.addf %296, %315 : vector<4x256xf32>
    %c0_206 = arith.constant 0 : index
    %c48 = arith.constant 48 : index
    %317 = vector.load %arg7[%c0_206, %c48] : memref<4x512xf32, #tpu.memory_space<vmem>>, vector<4x256xf32>
    %c45_207 = arith.constant 45 : index
    %c0_208 = arith.constant 0 : index
    %c0_209 = arith.constant 0 : index
    %318 = vector.load %arg4[%c45_207, %c0_208, %c0_209] : memref<49x4x256xf32, #tpu.memory_space<vmem>>, vector<1x4x256xf32>
    %319 = vector.shape_cast %318 : vector<1x4x256xf32> to vector<4x256xf32>
    %320 = arith.mulf %317, %319 : vector<4x256xf32>
    %321 = arith.addf %301, %320 : vector<4x256xf32>
    %c0_210 = arith.constant 0 : index
    %c49 = arith.constant 49 : index
    %322 = vector.load %arg7[%c0_210, %c49] : memref<4x512xf32, #tpu.memory_space<vmem>>, vector<4x256xf32>
    %c46_211 = arith.constant 46 : index
    %c0_212 = arith.constant 0 : index
    %c0_213 = arith.constant 0 : index
    %323 = vector.load %arg4[%c46_211, %c0_212, %c0_213] : memref<49x4x256xf32, #tpu.memory_space<vmem>>, vector<1x4x256xf32>
    %324 = vector.shape_cast %323 : vector<1x4x256xf32> to vector<4x256xf32>
    %325 = arith.mulf %322, %324 : vector<4x256xf32>
    %326 = arith.addf %306, %325 : vector<4x256xf32>
    %c0_214 = arith.constant 0 : index
    %c50 = arith.constant 50 : index
    %327 = vector.load %arg7[%c0_214, %c50] : memref<4x512xf32, #tpu.memory_space<vmem>>, vector<4x256xf32>
    %c47_215 = arith.constant 47 : index
    %c0_216 = arith.constant 0 : index
    %c0_217 = arith.constant 0 : index
    %328 = vector.load %arg4[%c47_215, %c0_216, %c0_217] : memref<49x4x256xf32, #tpu.memory_space<vmem>>, vector<1x4x256xf32>
    %329 = vector.shape_cast %328 : vector<1x4x256xf32> to vector<4x256xf32>
    %330 = arith.mulf %327, %329 : vector<4x256xf32>
    %331 = arith.addf %311, %330 : vector<4x256xf32>
    %c0_218 = arith.constant 0 : index
    %c51 = arith.constant 51 : index
    %332 = vector.load %arg7[%c0_218, %c51] : memref<4x512xf32, #tpu.memory_space<vmem>>, vector<4x256xf32>
    %c48_219 = arith.constant 48 : index
    %c0_220 = arith.constant 0 : index
    %c0_221 = arith.constant 0 : index
    %333 = vector.load %arg4[%c48_219, %c0_220, %c0_221] : memref<49x4x256xf32, #tpu.memory_space<vmem>>, vector<1x4x256xf32>
    %334 = vector.shape_cast %333 : vector<1x4x256xf32> to vector<4x256xf32>
    %335 = arith.mulf %332, %334 : vector<4x256xf32>
    %336 = arith.addf %316, %335 : vector<4x256xf32>
    %337 = arith.addf %336, %321 : vector<4x256xf32>
    %338 = arith.addf %326, %331 : vector<4x256xf32>
    %339 = arith.addf %337, %338 : vector<4x256xf32>
    %340 = vector.extract_strided_slice %339 {offsets = [0, 0], sizes = [2, 256], strides = [1, 1]} : vector<4x256xf32> to vector<2x256xf32>
    %341 = vector.extract_strided_slice %339 {offsets = [2, 0], sizes = [2, 256], strides = [1, 1]} : vector<4x256xf32> to vector<2x256xf32>
    %342 = arith.addf %340, %341 : vector<2x256xf32>
    %343 = arith.negf %342 : vector<2x256xf32>
    %344 = math.exp %343 : vector<2x256xf32>
    %cst_222 = arith.constant 1.000000e+00 : f32
    %345 = vector.broadcast %cst_222 : f32 to vector<2x256xf32>
    %346 = arith.addf %345, %344 : vector<2x256xf32>
    %347 = arith.divf %345, %346 : vector<2x256xf32>
    %348 = vector.extract_strided_slice %65 {offsets = [0, 0], sizes = [4, 256], strides = [1, 1]} : vector<8x256xf32> to vector<4x256xf32>
    %349 = vector.extract_strided_slice %347 {offsets = [0, 0], sizes = [1, 256], strides = [1, 1]} : vector<2x256xf32> to vector<1x256xf32>
    %350 = vector.broadcast %349 : vector<1x256xf32> to vector<4x256xf32>
    %351 = arith.mulf %348, %350 : vector<4x256xf32>
    %c0_223 = arith.constant 0 : index
    %c0_224 = arith.constant 0 : index
    %352 = vector.load %arg5[%c0_223, %c0_224] : memref<8x256xf32, #tpu.memory_space<vmem>>, vector<4x256xf32>
    tpu.vector_store %arg5[%c0_223, %c0_224], %351 {strides = array<i32>} : memref<8x256xf32, #tpu.memory_space<vmem>>, vector<4x256xf32>,
    %353 = vector.extract_strided_slice %65 {offsets = [4, 0], sizes = [4, 256], strides = [1, 1]} : vector<8x256xf32> to vector<4x256xf32>
    %354 = vector.extract_strided_slice %347 {offsets = [1, 0], sizes = [1, 256], strides = [1, 1]} : vector<2x256xf32> to vector<1x256xf32>
    %355 = vector.broadcast %354 : vector<1x256xf32> to vector<4x256xf32>
    %356 = arith.mulf %353, %355 : vector<4x256xf32>
    %c4_225 = arith.constant 4 : index
    %c0_226 = arith.constant 0 : index
    %357 = vector.load %arg5[%c4_225, %c0_226] : memref<8x256xf32, #tpu.memory_space<vmem>>, vector<4x256xf32>
    tpu.vector_store %arg5[%c4_225, %c0_226], %356 {strides = array<i32>} : memref<8x256xf32, #tpu.memory_space<vmem>>, vector<4x256xf32>,
    return
  }
  func.func @transform_0(%arg0: i32) -> (i32, i32) {
    %c0_i32 = arith.constant 0 : i32
    %c0_i32_0 = arith.constant 0 : i32
    return %arg0, %c0_i32 : i32, i32
  }
  func.func @transform_1(%arg0: i32) -> (i32, i32) {
    %c0_i32 = arith.constant 0 : i32
    %c0_i32_0 = arith.constant 0 : i32
    %c0_i32_1 = arith.constant 0 : i32
    return %c0_i32, %c0_i32_0 : i32, i32
  }
  func.func @transform_2(%arg0: i32) -> (i32, i32) {
    %c0_i32 = arith.constant 0 : i32
    %c0_i32_0 = arith.constant 0 : i32
    %c0_i32_1 = arith.constant 0 : i32
    return %c0_i32, %c0_i32_0 : i32, i32
  }
  func.func @transform_3(%arg0: i32) -> (i32, i32, i32) {
    %c0_i32 = arith.constant 0 : i32
    %c0_i32_0 = arith.constant 0 : i32
    %c0_i32_1 = arith.constant 0 : i32
    %c0_i32_2 = arith.constant 0 : i32
    return %c0_i32, %c0_i32_0, %c0_i32_1 : i32, i32, i32
  }
  func.func @transform_4(%arg0: i32) -> (i32, i32) {
    %c0_i32 = arith.constant 0 : i32
    %c0_i32_0 = arith.constant 0 : i32
    return %arg0, %c0_i32 : i32, i32
  }
}

</mosaic_0001>

<llo_original>
// kernel: tpu_custom_call.1
$region0: #{tpu_custom_call.1}
  #allocation0 [shape = 'u32[]', space=smem, size = 0x4, offset = 0x4, fixed_abs, tag = 'smem constant byte address 0x4 - core index']
  #allocation1 [shape = 'u32[144,128]{1,0:T(1,128)}', space=vmem, size = 0x12000, scoped, tag = 'internal scratch']
  #allocation2 [shape = 'f32[8,1]{1,0:T(8,128)}', space=vmem, size = 0x1000, scoped, tag = 'scratch operand']
  #allocation3 [shape = 'f32[4,512]{1,0:T(4,128)}', space=vmem, size = 0x2000, scoped, tag = 'scratch operand']
  %s0 = inlined_call_operand.hbm [shape: f32[8,256], index: 0, kind: input, shape index: {}]
  %s1 = inlined_call_operand.vmem [shape: f32[4,1], index: 1, kind: input, shape index: {}]
  %s2 = inlined_call_operand.vmem [shape: f32[4,1], index: 2, kind: input, shape index: {}]
  %s3 = inlined_call_operand.hbm [shape: f32[49,4,256], index: 3, kind: input, shape index: {}]
  %s4 = inlined_call_operand.hbm [shape: f32[8,256], index: 4, kind: output, shape index: {}]
  %s5 = sld [smem:[#allocation0]]
  $region34: #{tpu_custom_call.1} parent=0
    _
  %s7 = ssub.s32 1, %s5
  %s8 = scalar_select 0, %s7, %s5
  $region1: #{tpu_custom_call.1} parent=0
    #allocation4 [shape = 'u8[8192]{0}', space=vmem, size = 0x2000, scoped, tag = 'input window, operand 0, single buffered']
    #allocation5 [shape = 's32[1]{0}', space=sflag, size = 0x4, scoped, tag = 'scoped memory for tpu_custom_call.1']
    #allocation6 [shape = 's32[1]{0}', space=sflag, size = 0x4, scoped, tag = 'scoped memory for tpu_custom_call.1']
    #allocation7 [shape = 'u8[200704]{0}', space=vmem, size = 0x31000, scoped, tag = 'input window, operand 3, single buffered']
    #allocation8 [shape = 's32[1]{0}', space=sflag, size = 0x4, scoped, tag = 'scoped memory for tpu_custom_call.1']
    #allocation9 [shape = 'u8[8192]{0}', space=vmem, size = 0x2000, scoped, tag = 'output window, operand 0, single buffered']
    %9 = vsyncpa [#allocation5], 0
    %10 = vsyncpa [#allocation8], 0
    %11 = vsyncpa [#allocation6], 0
    // Predicated region
    $region2: #{tpu_custom_call.1} parent=1 // pred_check
      _
    $region3: #{tpu_custom_call.1} parent=1 // pred_check_branch
      %13 = sbr.rel (0) target = $region5
    $region4: #{tpu_custom_call.1} parent=1 // pred_region
      %s15 = ssub.s32 256, 256
      %16 = vsyncadd [#allocation5], %s15
      %s18 = sshll.u32 [#allocation4], 4
      %s19 = int_to_ptr.vmem [resolvable:$true] %s18
      %21 = dma.hbm_to_vmem [thread:$0]  %s0, 256, %s19, [#allocation5]
    $region5: #{tpu_custom_call.1} parent=1 // pred_fallthru
      _
    // Predicated region
    $region6: #{tpu_custom_call.1} parent=1 // pred_check
      _
    $region7: #{tpu_custom_call.1} parent=1 // pred_check_branch
      %23 = sbr.rel (0) target = $region9
    $region8: #{tpu_custom_call.1} parent=1 // pred_region
      _
    $region9: #{tpu_custom_call.1} parent=1 // pred_fallthru
      _
    // Predicated region
    $region10: #{tpu_custom_call.1} parent=1 // pred_check
      _
    $region11: #{tpu_custom_call.1} parent=1 // pred_check_branch
      %25 = sbr.rel (0) target = $region13
    $region12: #{tpu_custom_call.1} parent=1 // pred_region
      _
    $region13: #{tpu_custom_call.1} parent=1 // pred_fallthru
      _
    // Predicated region
    $region14: #{tpu_custom_call.1} parent=1 // pred_check
      _
    $region15: #{tpu_custom_call.1} parent=1 // pred_check_branch
      %27 = sbr.rel (0) target = $region17
    $region16: #{tpu_custom_call.1} parent=1 // pred_region
      %s29 = ssub.s32 6272, 6272
      %30 = vsyncadd [#allocation8], %s29
      %s31 = sshll.u32 [#allocation7], 4
      %s32 = int_to_ptr.vmem [resolvable:$true] %s31
      %37 = dma.hbm_to_vmem [thread:$0]  %s3, 6272, %s32, [#allocation8], 128, 128, 8
    $region17: #{tpu_custom_call.1} parent=1 // pred_fallthru
      _
    // Predicated region
    $region18: #{tpu_custom_call.1} parent=1 // pred_check
      _
    $region19: #{tpu_custom_call.1} parent=1 // pred_check_branch
      %39 = sbr.rel (0) target = $region21
    $region20: #{tpu_custom_call.1} parent=1 // pred_region
      %40 = dma.done [#allocation5], 256
    $region21: #{tpu_custom_call.1} parent=1 // pred_fallthru
      _
    // Predicated region
    $region22: #{tpu_custom_call.1} parent=1 // pred_check
      _
    $region23: #{tpu_custom_call.1} parent=1 // pred_check_branch
      %42 = sbr.rel (0) target = $region25
    $region24: #{tpu_custom_call.1} parent=1 // pred_region
      %43 = dma.done [#allocation8], 6272
    $region25: #{tpu_custom_call.1} parent=1 // pred_fallthru
      _
    %v44 = vld [vmem:[#allocation4] sm:$0xff]
    %v45 = vld [vmem:[#allocation4 + $0x8] sm:$0xff]
    %v46 = vld [vmem:[%s1] sm:$0xf]
    %v47 = vld [vmem:[%s2] sm:$0xf]
    %v48 = vadd.f32 %v44, %v45
    %49 = vadd.xlane.f32.xlu0 %v48
    %v50 = vpop.xlane.xlu0 %49
    %v51 = vrcp.pop 256.0
    %v52 = vmul.f32 %v50, %v51
    %v53 = vmax.f32 %v44, %v45
    %54 = vmax.xlane.f32.xlu0 %v53
    %v55 = vpop.xlane.xlu0 %54
    %v56 = vmul.f32 %v46, %v52
    %vm57 = vcmask 3072
    %v58 = vsel %vm57, %v56, 0.0
    %v59 = vrot.slane %v58, 4
    %v60 = vadd.f32 %v58, %v59
    %v61 = vrot.slane %v60, 2
    %v62 = vadd.f32 %v60, %v61
    %v63 = vrot.slane %v62, 1
    %v64 = vadd.f32 %v62, %v63
    %v65 = vmax.f32 %v64, 0.0
    %v66 = vmul.f32 %v47, %v65
    %v67 = vadd.f32 %v66, 0.0
    %v68 = vmul.f32 %v46, %v55
    %v69 = vsel %vm57, %v68, 0.0
    %v70 = vrot.slane %v69, 4
    %v71 = vadd.f32 %v69, %v70
    %v72 = vrot.slane %v71, 2
    %v73 = vadd.f32 %v71, %v72
    %v74 = vrot.slane %v73, 1
    %v75 = vadd.f32 %v73, %v74
    %v76 = vmax.f32 %v75, 0.0
    %v77 = vmul.f32 %v47, %v76
    %v78 = vadd.f32 %v77, 0.0
    %v79 = vadd.f32 %v67, %v78
    %v80 = vxor.u32 %v79, 2147483648
    %v81 = vmul.f32 %v80, 1.442695
    %v82 = vpow.pop %v81
    %v83 = vadd.f32 %v82, 1.0
    %v84 = vrcp.pop %v83
    %v85 = vmul.f32 1.0, %v84
    %86 = vst.msk [vmem:[#allocation2] sm:$0xf] %vm57, %v85
    %v88 = vrot.slane %v52, 4
    %v90 = vmul.f32 %v46, %v88
    %v91 = vsel %vm57, %v90, 0.0
    %v92 = vrot.slane %v91, 4
    %v93 = vadd.f32 %v91, %v92
    %v94 = vrot.slane %v93, 2
    %v95 = vadd.f32 %v93, %v94
    %v96 = vrot.slane %v95, 1
    %v97 = vadd.f32 %v95, %v96
    %v98 = vmax.f32 %v97, 0.0
    %v99 = vmul.f32 %v47, %v98
    %v100 = vadd.f32 %v99, 0.0
    %v102 = vrot.slane %v55, 4
    %v104 = vmul.f32 %v46, %v102
    %v105 = vsel %vm57, %v104, 0.0
    %v106 = vrot.slane %v105, 4
    %v107 = vadd.f32 %v105, %v106
    %v108 = vrot.slane %v107, 2
    %v109 = vadd.f32 %v107, %v108
    %v110 = vrot.slane %v109, 1
    %v111 = vadd.f32 %v109, %v110
    %v112 = vmax.f32 %v111, 0.0
    %v113 = vmul.f32 %v47, %v112
    %v114 = vadd.f32 %v113, 0.0
    %v115 = vadd.f32 %v100, %v114
    %v116 = vxor.u32 %v115, 2147483648
    %v117 = vmul.f32 %v116, 1.442695
    %v118 = vpow.pop %v117
    %v119 = vadd.f32 %v118, 1.0
    %v120 = vrcp.pop %v119
    %v121 = vmul.f32 1.0, %v120
    %122 = vst.msk [vmem:[#allocation2 + $0x4] sm:$0xf] %vm57, %v121
    %v123 = vld [vmem:[#allocation2] sm:$0xff]
    %125 = vset.pattern.permute.xlu0 0
    %126 = vperm.xlu0 %125, %v123
    %v127 = vpop.permute.xlu0 %126
    %v129 = vmul.f32 %v44, %v127
    %v130 = vmul.f32 %v45, %v127
    %vm131 = vcmask 1043456
    %v132 = vsel %vm131, %v129, 0.0
    %v133 = vrot.slane %v132, 4
    %v134 = vadd.f32 %v132, %v133
    %v135 = vrot.slane %v134, 2
    %v136 = vadd.f32 %v134, %v135
    %v137 = vrot.slane %v136, 1
    %v138 = vadd.f32 %v136, %v137
    %v139 = vsel %vm131, %v130, 0.0
    %v140 = vrot.slane %v139, 4
    %v141 = vadd.f32 %v139, %v140
    %v142 = vrot.slane %v141, 2
    %v143 = vadd.f32 %v141, %v142
    %v144 = vrot.slane %v143, 1
    %v145 = vadd.f32 %v143, %v144
    %v146 = vrcp.pop 4.0
    %v147 = vmul.f32 %v138, %v146
    %v148 = vmul.f32 %v145, %v146
    %v149 = vsel %vm131, %v129, -inf
    %v150 = vrot.slane %v149, 4
    %v151 = vmax.f32 %v149, %v150
    %v152 = vrot.slane %v151, 2
    %v153 = vmax.f32 %v151, %v152
    %v154 = vrot.slane %v153, 1
    %v155 = vmax.f32 %v153, %v154
    %v156 = vsel %vm131, %v130, -inf
    %v157 = vrot.slane %v156, 4
    %v158 = vmax.f32 %v156, %v157
    %v159 = vrot.slane %v158, 2
    %v160 = vmax.f32 %v158, %v159
    %v161 = vrot.slane %v160, 1
    %v162 = vmax.f32 %v160, %v161
    %v165 = vcombine.low %v147, %v148
    %v167 = vunpack.c.l.s4 1966171168
    %v168 = vunpack.c.0.s8 %v167
    %v169 = vlaneseq
    %v170 = vshrl.u32 %v169, 7
    %v171 = vsub.s32 %v168, %v170
    %v172 = vrot.slane %v165, %v171
    %v174 = vunpack.c.l.s4 1966171168
    %v175 = vunpack.c.0.s8 %v174
    %v176 = vlaneseq
    %v177 = vshrl.u32 %v176, 7
    %v178 = vsub.s32 %v175, %v177
    %v179 = vrot.slane %v172, %v178
    %v181 = vlaneseq
    %vm182 = vcmp.ge.s32.totalorder %v181, 0
    %vm183 = vcmp.lt.s32.totalorder %v181, 256
    %vm184 = vmand %vm182, %vm183
    %185 = vst.msk [vmem:[#allocation3] ss:$4 sm:$0x3] %vm184, %v179
    %s186 = scalar_lea.vmem [#allocation3], 8
    %187 = vst.msk [vmem:[%s186] ss:$4 sm:$0x3] %vm184, %v179
    %v190 = vcombine.low %v155, %v162
    %v192 = vunpack.c.l.s4 1966171168
    %v193 = vunpack.c.0.s8 %v192
    %v194 = vlaneseq
    %v195 = vshrl.u32 %v194, 7
    %v196 = vsub.s32 %v193, %v195
    %v197 = vrot.slane %v190, %v196
    %v199 = vunpack.c.l.s4 1966171168
    %v200 = vunpack.c.0.s8 %v199
    %v201 = vlaneseq
    %v202 = vshrl.u32 %v201, 7
    %v203 = vsub.s32 %v200, %v202
    %v204 = vrot.slane %v197, %v203
    %s206 = scalar_lea.vmem [#allocation3], 2
    %207 = vst.msk [vmem:[%s206] ss:$4 sm:$0x3] %vm184, %v204
    %s208 = scalar_lea.vmem [#allocation3], 10
    %209 = vst.msk [vmem:[%s208] ss:$4 sm:$0x3] %vm184, %v204
    %v212 = vrot.slane %v129, 4
    %v213 = vrot.slane %v130, 4
    %v216 = vsel %vm131, %v212, 0.0
    %v217 = vrot.slane %v216, 4
    %v218 = vadd.f32 %v216, %v217
    %v219 = vrot.slane %v218, 2
    %v220 = vadd.f32 %v218, %v219
    %v221 = vrot.slane %v220, 1
    %v222 = vadd.f32 %v220, %v221
    %v223 = vsel %vm131, %v213, 0.0
    %v224 = vrot.slane %v223, 4
    %v225 = vadd.f32 %v223, %v224
    %v226 = vrot.slane %v225, 2
    %v227 = vadd.f32 %v225, %v226
    %v228 = vrot.slane %v227, 1
    %v229 = vadd.f32 %v227, %v228
    %v230 = vmul.f32 %v222, %v146
    %v231 = vmul.f32 %v229, %v146
    %vm232 = vcmask 1047556
    %v233 = vsel %vm232, %v129, -inf
    %v234 = vrot.slane %v233, 4
    %v235 = vmax.f32 %v233, %v234
    %v236 = vrot.slane %v235, 2
    %v237 = vmax.f32 %v235, %v236
    %v238 = vrot.slane %v237, 1
    %v239 = vmax.f32 %v237, %v238
    %v240 = vsel %vm232, %v130, -inf
    %v241 = vrot.slane %v240, 4
    %v242 = vmax.f32 %v240, %v241
    %v243 = vrot.slane %v242, 2
    %v244 = vmax.f32 %v242, %v243
    %v245 = vrot.slane %v244, 1
    %v246 = vmax.f32 %v244, %v245
    %v249 = vcombine.low %v230, %v231
    %v251 = vunpack.c.l.s4 1966171168
    %v252 = vunpack.c.0.s8 %v251
    %v253 = vlaneseq
    %v254 = vshrl.u32 %v253, 7
    %v255 = vsub.s32 %v252, %v254
    %v256 = vrot.slane %v249, %v255
    %v258 = vunpack.c.l.s4 1966171168
    %v259 = vunpack.c.0.s8 %v258
    %v260 = vlaneseq
    %v261 = vshrl.u32 %v260, 7
    %v262 = vsub.s32 %v259, %v261
    %v263 = vrot.slane %v256, %v262
    %s265 = scalar_lea.vmem [#allocation3], 1
    %266 = vst.msk [vmem:[%s265] ss:$4 sm:$0x3] %vm184, %v263
    %s267 = scalar_lea.vmem [#allocation3], 9
    %268 = vst.msk [vmem:[%s267] ss:$4 sm:$0x3] %vm184, %v263
    %v271 = vcombine.low %v239, %v246
    %v273 = vunpack.c.l.s4 1966171168
    %v274 = vunpack.c.0.s8 %v273
    %v275 = vlaneseq
    %v276 = vshrl.u32 %v275, 7
    %v277 = vsub.s32 %v274, %v276
    %v278 = vrot.slane %v271, %v277
    %v280 = vunpack.c.l.s4 1966171168
    %v281 = vunpack.c.0.s8 %v280
    %v282 = vlaneseq
    %v283 = vshrl.u32 %v282, 7
    %v284 = vsub.s32 %v281, %v283
    %v285 = vrot.slane %v278, %v284
    %s287 = scalar_lea.vmem [#allocation3], 3
    %288 = vst.msk [vmem:[%s287] ss:$4 sm:$0x3] %vm184, %v285
    %s289 = scalar_lea.vmem [#allocation3], 11
    %290 = vst.msk [vmem:[%s289] ss:$4 sm:$0x3] %vm184, %v285
    %v291 = vld [vmem:[#allocation3 + $0x4] sm:$0xff]
    %v292 = vld [vmem:[#allocation3 + $0xc] sm:$0xf]
    %v293 = vld [vmem:[#allocation7] sm:$0xff]
    %295 = vrot.lane.b32.xlu0 %v293, 77
    %v296 = vpop.permute.xlu0 %295
    %v297 = vrot.slane %v296, 4
    %vm298 = vcmask 629760
    %v299 = vsel %vm298, %v297, %v296
    %v302 = vmul.f32 %v291, %v299
    %v303 = vmul.f32 %v292, %v297
    %v304 = vadd.f32 %v302, 0.0
    %v305 = vadd.f32 %v303, 0.0
    %s306 = scalar_lea.vmem [#allocation7], 8
    %v307 = vld [vmem:[%s306] sm:$0xff]
    %309 = vrot.lane.b32.xlu0 %v307, 78
    %v310 = vpop.permute.xlu0 %309
    %v311 = vrot.slane %v310, 4
    %vm312 = vcmask 637952
    %v313 = vsel %vm312, %v311, %v310
    %v316 = vmul.f32 %v291, %v313
    %v317 = vmul.f32 %v292, %v311
    %v318 = vadd.f32 %v316, 0.0
    %v319 = vadd.f32 %v317, 0.0
    %s320 = scalar_lea.vmem [#allocation7], 16
    %v321 = vld [vmem:[%s320] sm:$0xff]
    %323 = vrot.lane.b32.xlu0 %v321, 79
    %v324 = vpop.permute.xlu0 %323
    %v325 = vrot.slane %v324, 4
    %vm326 = vcmask 646144
    %v327 = vsel %vm326, %v325, %v324
    %v330 = vmul.f32 %v291, %v327
    %v331 = vmul.f32 %v292, %v325
    %v332 = vadd.f32 %v330, 0.0
    %v333 = vadd.f32 %v331, 0.0
    %s334 = scalar_lea.vmem [#allocation7], 24
    %v335 = vld [vmem:[%s334] sm:$0xff]
    %337 = vrot.lane.b32.xlu0 %v335, 80
    %v338 = vpop.permute.xlu0 %337
    %v339 = vrot.slane %v338, 4
    %vm340 = vcmask 654336
    %v341 = vsel %vm340, %v339, %v338
    %v344 = vmul.f32 %v291, %v341
    %v345 = vmul.f32 %v292, %v339
    %v346 = vadd.f32 %v344, 0.0
    %v347 = vadd.f32 %v345, 0.0
    %s348 = scalar_lea.vmem [#allocation7], 32
    %v349 = vld [vmem:[%s348] sm:$0xff]
    %351 = vrot.lane.b32.xlu0 %v349, 81
    %v352 = vpop.permute.xlu0 %351
    %v353 = vrot.slane %v352, 4
    %vm354 = vcmask 662528
    %v355 = vsel %vm354, %v353, %v352
    %v358 = vmul.f32 %v291, %v355
    %v359 = vmul.f32 %v292, %v353
    %362 = vrot.lane.b32.xlu0 %v358, 124
    %v363 = vpop.permute.xlu0 %362
    %364 = vrot.lane.b32.xlu0 %v359, 124
    %v365 = vpop.permute.xlu0 %364
    %v366 = vrot.slane %v363, 4
    %v367 = vrot.slane %v365, 4
    %v368 = vsel %vm131, %v366, %v367
    %vm369 = vcmask 1014784
    %v370 = vsel %vm369, %v363, %v368
    %v373 = vadd.f32 %v304, %v370
    %v374 = vadd.f32 %v305, %v365
    %s375 = scalar_lea.vmem [#allocation7], 40
    %v376 = vld [vmem:[%s375] sm:$0xff]
    %378 = vrot.lane.b32.xlu0 %v376, 82
    %v379 = vpop.permute.xlu0 %378
    %v380 = vrot.slane %v379, 4
    %vm381 = vcmask 670720
    %v382 = vsel %vm381, %v380, %v379
    %v385 = vmul.f32 %v291, %v382
    %v386 = vmul.f32 %v292, %v380
    %389 = vrot.lane.b32.xlu0 %v385, 124
    %v390 = vpop.permute.xlu0 %389
    %391 = vrot.lane.b32.xlu0 %v386, 124
    %v392 = vpop.permute.xlu0 %391
    %v393 = vrot.slane %v390, 4
    %v394 = vrot.slane %v392, 4
    %v395 = vsel %vm131, %v393, %v394
    %v396 = vsel %vm369, %v390, %v395
    %v399 = vadd.f32 %v318, %v396
    %v400 = vadd.f32 %v319, %v392
    %s401 = scalar_lea.vmem [#allocation7], 48
    %v402 = vld [vmem:[%s401] sm:$0xff]
    %404 = vrot.lane.b32.xlu0 %v402, 83
    %v405 = vpop.permute.xlu0 %404
    %v406 = vrot.slane %v405, 4
    %vm407 = vcmask 678912
    %v408 = vsel %vm407, %v406, %v405
    %v411 = vmul.f32 %v291, %v408
    %v412 = vmul.f32 %v292, %v406
    %415 = vrot.lane.b32.xlu0 %v411, 124
    %v416 = vpop.permute.xlu0 %415
    %417 = vrot.lane.b32.xlu0 %v412, 124
    %v418 = vpop.permute.xlu0 %417
    %v419 = vrot.slane %v416, 4
    %v420 = vrot.slane %v418, 4
    %v421 = vsel %vm131, %v419, %v420
    %v422 = vsel %vm369, %v416, %v421
    %v425 = vadd.f32 %v332, %v422
    %v426 = vadd.f32 %v333, %v418
    %s427 = scalar_lea.vmem [#allocation7], 56
    %v428 = vld [vmem:[%s427] sm:$0xff]
    %430 = vrot.lane.b32.xlu0 %v428, 93
    %v431 = vpop.permute.xlu0 %430
    %v432 = vrot.slane %v431, 4
    %vm433 = vcmask 760832
    %v434 = vsel %vm433, %v432, %v431
    %v437 = vmul.f32 %v291, %v434
    %v438 = vmul.f32 %v292, %v432
    %441 = vrot.lane.b32.xlu0 %v437, 115
    %v442 = vpop.permute.xlu0 %441
    %443 = vrot.lane.b32.xlu0 %v438, 115
    %v444 = vpop.permute.xlu0 %443
    %v445 = vrot.slane %v442, 4
    %v446 = vrot.slane %v444, 4
    %v447 = vsel %vm131, %v445, %v446
    %vm448 = vcmask 941056
    %v449 = vsel %vm448, %v442, %v447
    %v452 = vadd.f32 %v346, %v449
    %v453 = vadd.f32 %v347, %v444
    %s454 = scalar_lea.vmem [#allocation7], 64
    %v455 = vld [vmem:[%s454] sm:$0xff]
    %457 = vrot.lane.b32.xlu0 %v455, 94
    %v458 = vpop.permute.xlu0 %457
    %v459 = vrot.slane %v458, 4
    %vm460 = vcmask 769024
    %v461 = vsel %vm460, %v459, %v458
    %v464 = vmul.f32 %v291, %v461
    %v465 = vmul.f32 %v292, %v459
    %468 = vrot.lane.b32.xlu0 %v464, 111
    %v469 = vpop.permute.xlu0 %468
    %470 = vrot.lane.b32.xlu0 %v465, 111
    %v471 = vpop.permute.xlu0 %470
    %v472 = vrot.slane %v469, 4
    %v473 = vrot.slane %v471, 4
    %v474 = vsel %vm131, %v472, %v473
    %vm475 = vcmask 908288
    %v476 = vsel %vm475, %v469, %v474
    %v479 = vadd.f32 %v373, %v476
    %v480 = vadd.f32 %v374, %v471
    %s481 = scalar_lea.vmem [#allocation7], 72
    %v482 = vld [vmem:[%s481] sm:$0xff]
    %484 = vrot.lane.b32.xlu0 %v482, 95
    %v485 = vpop.permute.xlu0 %484
    %v486 = vrot.slane %v485, 4
    %vm487 = vcmask 777216
    %v488 = vsel %vm487, %v486, %v485
    %v491 = vmul.f32 %v291, %v488
    %v492 = vmul.f32 %v292, %v486
    %495 = vrot.lane.b32.xlu0 %v491, 111
    %v496 = vpop.permute.xlu0 %495
    %497 = vrot.lane.b32.xlu0 %v492, 111
    %v498 = vpop.permute.xlu0 %497
    %v499 = vrot.slane %v496, 4
    %v500 = vrot.slane %v498, 4
    %v501 = vsel %vm131, %v499, %v500
    %v502 = vsel %vm475, %v496, %v501
    %v505 = vadd.f32 %v399, %v502
    %v506 = vadd.f32 %v400, %v498
    %s507 = scalar_lea.vmem [#allocation7], 80
    %v508 = vld [vmem:[%s507] sm:$0xff]
    %510 = vrot.lane.b32.xlu0 %v508, 96
    %v511 = vpop.permute.xlu0 %510
    %v512 = vrot.slane %v511, 4
    %vm513 = vcmask 785408
    %v514 = vsel %vm513, %v512, %v511
    %v517 = vmul.f32 %v291, %v514
    %v518 = vmul.f32 %v292, %v512
    %521 = vrot.lane.b32.xlu0 %v517, 111
    %v522 = vpop.permute.xlu0 %521
    %523 = vrot.lane.b32.xlu0 %v518, 111
    %v524 = vpop.permute.xlu0 %523
    %v525 = vrot.slane %v522, 4
    %v526 = vrot.slane %v524, 4
    %v527 = vsel %vm131, %v525, %v526
    %v528 = vsel %vm475, %v522, %v527
    %v531 = vadd.f32 %v425, %v528
    %v532 = vadd.f32 %v426, %v524
    %s533 = scalar_lea.vmem [#allocation7], 88
    %v534 = vld [vmem:[%s533] sm:$0xff]
    %536 = vrot.lane.b32.xlu0 %v534, 97
    %v537 = vpop.permute.xlu0 %536
    %v538 = vrot.slane %v537, 4
    %vm539 = vcmask 793600
    %v540 = vsel %vm539, %v538, %v537
    %v543 = vmul.f32 %v291, %v540
    %v544 = vmul.f32 %v292, %v538
    %547 = vrot.lane.b32.xlu0 %v543, 111
    %v548 = vpop.permute.xlu0 %547
    %549 = vrot.lane.b32.xlu0 %v544, 111
    %v550 = vpop.permute.xlu0 %549
    %v551 = vrot.slane %v548, 4
    %v552 = vrot.slane %v550, 4
    %v553 = vsel %vm131, %v551, %v552
    %v554 = vsel %vm475, %v548, %v553
    %v557 = vadd.f32 %v452, %v554
    %v558 = vadd.f32 %v453, %v550
    %s559 = scalar_lea.vmem [#allocation7], 96
    %v560 = vld [vmem:[%s559] sm:$0xff]
    %562 = vrot.lane.b32.xlu0 %v560, 98
    %v563 = vpop.permute.xlu0 %562
    %v564 = vrot.slane %v563, 4
    %vm565 = vcmask 801792
    %v566 = vsel %vm565, %v564, %v563
    %v569 = vmul.f32 %v291, %v566
    %v570 = vmul.f32 %v292, %v564
    %573 = vrot.lane.b32.xlu0 %v569, 107
    %v574 = vpop.permute.xlu0 %573
    %575 = vrot.lane.b32.xlu0 %v570, 107
    %v576 = vpop.permute.xlu0 %575
    %v577 = vrot.slane %v574, 4
    %v578 = vrot.slane %v576, 4
    %v579 = vsel %vm131, %v577, %v578
    %vm580 = vcmask 875520
    %v581 = vsel %vm580, %v574, %v579
    %v584 = vadd.f32 %v479, %v581
    %v585 = vadd.f32 %v480, %v576
    %s586 = scalar_lea.vmem [#allocation7], 104
    %v587 = vld [vmem:[%s586] sm:$0xff]
    %589 = vrot.lane.b32.xlu0 %v587, 99
    %v590 = vpop.permute.xlu0 %589
    %v591 = vrot.slane %v590, 4
    %vm592 = vcmask 809984
    %v593 = vsel %vm592, %v591, %v590
    %v596 = vmul.f32 %v291, %v593
    %v597 = vmul.f32 %v292, %v591
    %600 = vrot.lane.b32.xlu0 %v596, 107
    %v601 = vpop.permute.xlu0 %600
    %602 = vrot.lane.b32.xlu0 %v597, 107
    %v603 = vpop.permute.xlu0 %602
    %v604 = vrot.slane %v601, 4
    %v605 = vrot.slane %v603, 4
    %v606 = vsel %vm131, %v604, %v605
    %v607 = vsel %vm580, %v601, %v606
    %v610 = vadd.f32 %v505, %v607
    %v611 = vadd.f32 %v506, %v603
    %s612 = scalar_lea.vmem [#allocation7], 112
    %v613 = vld [vmem:[%s612] sm:$0xff]
    %615 = vrot.lane.b32.xlu0 %v613, 109
    %v616 = vpop.permute.xlu0 %615
    %v617 = vrot.slane %v616, 4
    %vm618 = vcmask 891904
    %v619 = vsel %vm618, %v617, %v616
    %v622 = vmul.f32 %v291, %v619
    %v623 = vmul.f32 %v292, %v617
    %626 = vrot.lane.b32.xlu0 %v622, 98
    %v627 = vpop.permute.xlu0 %626
    %628 = vrot.lane.b32.xlu0 %v623, 98
    %v629 = vpop.permute.xlu0 %628
    %v630 = vrot.slane %v627, 4
    %v631 = vrot.slane %v629, 4
    %v632 = vsel %vm131, %v630, %v631
    %v633 = vsel %vm565, %v627, %v632
    %v636 = vadd.f32 %v531, %v633
    %v637 = vadd.f32 %v532, %v629
    %s638 = scalar_lea.vmem [#allocation7], 120
    %v639 = vld [vmem:[%s638] sm:$0xff]
    %641 = vrot.lane.b32.xlu0 %v639, 110
    %v642 = vpop.permute.xlu0 %641
    %v643 = vrot.slane %v642, 4
    %vm644 = vcmask 900096
    %v645 = vsel %vm644, %v643, %v642
    %v648 = vmul.f32 %v291, %v645
    %v649 = vmul.f32 %v292, %v643
    %652 = vrot.lane.b32.xlu0 %v648, 98
    %v653 = vpop.permute.xlu0 %652
    %654 = vrot.lane.b32.xlu0 %v649, 98
    %v655 = vpop.permute.xlu0 %654
    %v656 = vrot.slane %v653, 4
    %v657 = vrot.slane %v655, 4
    %v658 = vsel %vm131, %v656, %v657
    %v659 = vsel %vm565, %v653, %v658
    %v662 = vadd.f32 %v557, %v659
    %v663 = vadd.f32 %v558, %v655
    %s664 = scalar_lea.vmem [#allocation7], 128
    %v665 = vld [vmem:[%s664] sm:$0xff]
    %667 = vrot.lane.b32.xlu0 %v665, 111
    %v668 = vpop.permute.xlu0 %667
    %v669 = vrot.slane %v668, 4
    %v670 = vsel %vm475, %v669, %v668
    %v673 = vmul.f32 %v291, %v670
    %v674 = vmul.f32 %v292, %v669
    %677 = vrot.lane.b32.xlu0 %v673, 94
    %v678 = vpop.permute.xlu0 %677
    %679 = vrot.lane.b32.xlu0 %v674, 94
    %v680 = vpop.permute.xlu0 %679
    %v681 = vrot.slane %v678, 4
    %v682 = vrot.slane %v680, 4
    %v683 = vsel %vm131, %v681, %v682
    %v684 = vsel %vm460, %v678, %v683
    %v687 = vadd.f32 %v584, %v684
    %v688 = vadd.f32 %v585, %v680
    %s689 = scalar_lea.vmem [#allocation7], 136
    %v690 = vld [vmem:[%s689] sm:$0xff]
    %692 = vrot.lane.b32.xlu0 %v690, 112
    %v693 = vpop.permute.xlu0 %692
    %v694 = vrot.slane %v693, 4
    %vm695 = vcmask 916480
    %v696 = vsel %vm695, %v694, %v693
    %v699 = vmul.f32 %v291, %v696
    %v700 = vmul.f32 %v292, %v694
    %703 = vrot.lane.b32.xlu0 %v699, 94
    %v704 = vpop.permute.xlu0 %703
    %705 = vrot.lane.b32.xlu0 %v700, 94
    %v706 = vpop.permute.xlu0 %705
    %v707 = vrot.slane %v704, 4
    %v708 = vrot.slane %v706, 4
    %v709 = vsel %vm131, %v707, %v708
    %v710 = vsel %vm460, %v704, %v709
    %v713 = vadd.f32 %v610, %v710
    %v714 = vadd.f32 %v611, %v706
    %s715 = scalar_lea.vmem [#allocation7], 144
    %v716 = vld [vmem:[%s715] sm:$0xff]
    %718 = vrot.lane.b32.xlu0 %v716, 113
    %v719 = vpop.permute.xlu0 %718
    %v720 = vrot.slane %v719, 4
    %vm721 = vcmask 924672
    %v722 = vsel %vm721, %v720, %v719
    %v725 = vmul.f32 %v291, %v722
    %v726 = vmul.f32 %v292, %v720
    %729 = vrot.lane.b32.xlu0 %v725, 94
    %v730 = vpop.permute.xlu0 %729
    %731 = vrot.lane.b32.xlu0 %v726, 94
    %v732 = vpop.permute.xlu0 %731
    %v733 = vrot.slane %v730, 4
    %v734 = vrot.slane %v732, 4
    %v735 = vsel %vm131, %v733, %v734
    %v736 = vsel %vm460, %v730, %v735
    %v739 = vadd.f32 %v636, %v736
    %v740 = vadd.f32 %v637, %v732
    %s741 = scalar_lea.vmem [#allocation7], 152
    %v742 = vld [vmem:[%s741] sm:$0xff]
    %744 = vrot.lane.b32.xlu0 %v742, 114
    %v745 = vpop.permute.xlu0 %744
    %v746 = vrot.slane %v745, 4
    %vm747 = vcmask 932864
    %v748 = vsel %vm747, %v746, %v745
    %v751 = vmul.f32 %v291, %v748
    %v752 = vmul.f32 %v292, %v746
    %755 = vrot.lane.b32.xlu0 %v751, 94
    %v756 = vpop.permute.xlu0 %755
    %757 = vrot.lane.b32.xlu0 %v752, 94
    %v758 = vpop.permute.xlu0 %757
    %v759 = vrot.slane %v756, 4
    %v760 = vrot.slane %v758, 4
    %v761 = vsel %vm131, %v759, %v760
    %v762 = vsel %vm460, %v756, %v761
    %v765 = vadd.f32 %v662, %v762
    %v766 = vadd.f32 %v663, %v758
    %s767 = scalar_lea.vmem [#allocation7], 160
    %v768 = vld [vmem:[%s767] sm:$0xff]
    %770 = vrot.lane.b32.xlu0 %v768, 115
    %v771 = vpop.permute.xlu0 %770
    %v772 = vrot.slane %v771, 4
    %v773 = vsel %vm448, %v772, %v771
    %v776 = vmul.f32 %v291, %v773
    %v777 = vmul.f32 %v292, %v772
    %780 = vrot.lane.b32.xlu0 %v776, 90
    %v781 = vpop.permute.xlu0 %780
    %782 = vrot.lane.b32.xlu0 %v777, 90
    %v783 = vpop.permute.xlu0 %782
    %v784 = vrot.slane %v781, 4
    %v785 = vrot.slane %v783, 4
    %v786 = vsel %vm131, %v784, %v785
    %vm787 = vcmask 736256
    %v788 = vsel %vm787, %v781, %v786
    %v791 = vadd.f32 %v687, %v788
    %v792 = vadd.f32 %v688, %v783
    %s793 = scalar_lea.vmem [#allocation7], 168
    %v794 = vld [vmem:[%s793] sm:$0xff]
    %796 = vrot.lane.b32.xlu0 %v794, 125
    %v797 = vpop.permute.xlu0 %796
    %v798 = vrot.slane %v797, 4
    %vm799 = vcmask 1022976
    %v800 = vsel %vm799, %v798, %v797
    %v803 = vmul.f32 %v291, %v800
    %v804 = vmul.f32 %v292, %v798
    %807 = vrot.lane.b32.xlu0 %v803, 81
    %v808 = vpop.permute.xlu0 %807
    %809 = vrot.lane.b32.xlu0 %v804, 81
    %v810 = vpop.permute.xlu0 %809
    %v811 = vrot.slane %v808, 4
    %v812 = vrot.slane %v810, 4
    %v813 = vsel %vm131, %v811, %v812
    %v814 = vsel %vm354, %v808, %v813
    %v817 = vadd.f32 %v713, %v814
    %v818 = vadd.f32 %v714, %v810
    %s819 = scalar_lea.vmem [#allocation7], 176
    %v820 = vld [vmem:[%s819] sm:$0xff]
    %822 = vrot.lane.b32.xlu0 %v820, 126
    %v823 = vpop.permute.xlu0 %822
    %v824 = vrot.slane %v823, 4
    %vm825 = vcmask 1031168
    %v826 = vsel %vm825, %v824, %v823
    %v829 = vmul.f32 %v291, %v826
    %v830 = vmul.f32 %v292, %v824
    %833 = vrot.lane.b32.xlu0 %v829, 81
    %v834 = vpop.permute.xlu0 %833
    %835 = vrot.lane.b32.xlu0 %v830, 81
    %v836 = vpop.permute.xlu0 %835
    %v837 = vrot.slane %v834, 4
    %v838 = vrot.slane %v836, 4
    %v839 = vsel %vm131, %v837, %v838
    %v840 = vsel %vm354, %v834, %v839
    %v843 = vadd.f32 %v739, %v840
    %v844 = vadd.f32 %v740, %v836
    %s845 = scalar_lea.vmem [#allocation7], 184
    %v846 = vld [vmem:[%s845] sm:$0xff]
    %848 = vrot.lane.b32.xlu0 %v846, 127
    %v849 = vpop.permute.xlu0 %848
    %v850 = vrot.slane %v849, 4
    %vm851 = vcmask 1039360
    %v852 = vsel %vm851, %v850, %v849
    %v855 = vmul.f32 %v291, %v852
    %v856 = vmul.f32 %v292, %v850
    %859 = vrot.lane.b32.xlu0 %v855, 81
    %v860 = vpop.permute.xlu0 %859
    %861 = vrot.lane.b32.xlu0 %v856, 81
    %v862 = vpop.permute.xlu0 %861
    %v863 = vrot.slane %v860, 4
    %v864 = vrot.slane %v862, 4
    %v865 = vsel %vm131, %v863, %v864
    %v866 = vsel %vm354, %v860, %v865
    %v869 = vadd.f32 %v765, %v866
    %v870 = vadd.f32 %v766, %v862
    %v871 = vld [vmem:[#allocation3] sm:$0xff]
    %s872 = scalar_lea.vmem [#allocation7], 192
    %v873 = vld [vmem:[%s872] sm:$0xff]
    %v874 = vmul.f32 %v871, %v873
    %876 = vrot.lane.b32.xlu0 %v874, 77
    %v877 = vpop.permute.xlu0 %876
    %v878 = vrot.slane %v877, 4
    %v879 = vsel %vm298, %v878, %v877
    %v882 = vadd.f32 %v791, %v879
    %v883 = vadd.f32 %v792, %v878
    %v884 = vld [vmem:[#allocation3 + $0x8] sm:$0xf]
    %s885 = scalar_lea.vmem [#allocation7], 200
    %v886 = vld [vmem:[%s885] sm:$0xff]
    %888 = vrot.lane.b32.xlu0 %v886, 1
    %v889 = vpop.permute.xlu0 %888
    %v890 = vrot.slane %v889, 4
    %vm891 = vcmask 7168
    %v892 = vsel %vm891, %v890, %v889
    %v895 = vmul.f32 %v871, %v892
    %v896 = vmul.f32 %v884, %v890
    %899 = vrot.lane.b32.xlu0 %v895, 77
    %v900 = vpop.permute.xlu0 %899
    %901 = vrot.lane.b32.xlu0 %v896, 77
    %v902 = vpop.permute.xlu0 %901
    %v903 = vrot.slane %v900, 4
    %v904 = vsel %vm298, %v903, %v900
    %v905 = vsel %vm298, %v903, %v902
    %v908 = vadd.f32 %v817, %v904
    %v909 = vadd.f32 %v818, %v905
    %s910 = scalar_lea.vmem [#allocation7], 208
    %v911 = vld [vmem:[%s910] sm:$0xff]
    %913 = vrot.lane.b32.xlu0 %v911, 2
    %v914 = vpop.permute.xlu0 %913
    %v915 = vrot.slane %v914, 4
    %vm916 = vcmask 15360
    %v917 = vsel %vm916, %v915, %v914
    %v920 = vmul.f32 %v871, %v917
    %v921 = vmul.f32 %v884, %v915
    %924 = vrot.lane.b32.xlu0 %v920, 77
    %v925 = vpop.permute.xlu0 %924
    %926 = vrot.lane.b32.xlu0 %v921, 77
    %v927 = vpop.permute.xlu0 %926
    %v928 = vrot.slane %v925, 4
    %v929 = vsel %vm298, %v928, %v925
    %v930 = vsel %vm298, %v928, %v927
    %v933 = vadd.f32 %v843, %v929
    %v934 = vadd.f32 %v844, %v930
    %s935 = scalar_lea.vmem [#allocation7], 216
    %v936 = vld [vmem:[%s935] sm:$0xff]
    %938 = vrot.lane.b32.xlu0 %v936, 3
    %v939 = vpop.permute.xlu0 %938
    %v940 = vrot.slane %v939, 4
    %vm941 = vcmask 23552
    %v942 = vsel %vm941, %v940, %v939
    %v945 = vmul.f32 %v871, %v942
    %v946 = vmul.f32 %v884, %v940
    %949 = vrot.lane.b32.xlu0 %v945, 77
    %v950 = vpop.permute.xlu0 %949
    %951 = vrot.lane.b32.xlu0 %v946, 77
    %v952 = vpop.permute.xlu0 %951
    %v953 = vrot.slane %v950, 4
    %v954 = vsel %vm298, %v953, %v950
    %v955 = vsel %vm298, %v953, %v952
    %v958 = vadd.f32 %v869, %v954
    %v959 = vadd.f32 %v870, %v955
    %s960 = scalar_lea.vmem [#allocation7], 224
    %v961 = vld [vmem:[%s960] sm:$0xff]
    %963 = vrot.lane.b32.xlu0 %v961, 13
    %v964 = vpop.permute.xlu0 %963
    %v965 = vrot.slane %v964, 4
    %vm966 = vcmask 105472
    %v967 = vsel %vm966, %v965, %v964
    %v970 = vmul.f32 %v871, %v967
    %v971 = vmul.f32 %v884, %v965
    %974 = vrot.lane.b32.xlu0 %v970, 64
    %v975 = vpop.permute.xlu0 %974
    %976 = vrot.lane.b32.xlu0 %v971, 64
    %v977 = vpop.permute.xlu0 %976
    %v978 = vrot.slane %v975, 4
    %vm979 = vcmask 523264
    %v980 = vsel %vm979, %v978, %v975
    %v981 = vsel %vm979, %v978, %v977
    %v984 = vadd.f32 %v882, %v980
    %v985 = vadd.f32 %v883, %v981
    %s986 = scalar_lea.vmem [#allocation7], 232
    %v987 = vld [vmem:[%s986] sm:$0xff]
    %989 = vrot.lane.b32.xlu0 %v987, 14
    %v990 = vpop.permute.xlu0 %989
    %v991 = vrot.slane %v990, 4
    %vm992 = vcmask 113664
    %v993 = vsel %vm992, %v991, %v990
    %v996 = vmul.f32 %v871, %v993
    %v997 = vmul.f32 %v884, %v991
    %1000 = vrot.lane.b32.xlu0 %v996, 64
    %v1001 = vpop.permute.xlu0 %1000
    %1002 = vrot.lane.b32.xlu0 %v997, 64
    %v1003 = vpop.permute.xlu0 %1002
    %v1004 = vrot.slane %v1001, 4
    %v1005 = vsel %vm979, %v1004, %v1001
    %v1006 = vsel %vm979, %v1004, %v1003
    %v1009 = vadd.f32 %v908, %v1005
    %v1010 = vadd.f32 %v909, %v1006
    %s1011 = scalar_lea.vmem [#allocation7], 240
    %v1012 = vld [vmem:[%s1011] sm:$0xff]
    %1014 = vrot.lane.b32.xlu0 %v1012, 15
    %v1015 = vpop.permute.xlu0 %1014
    %v1016 = vrot.slane %v1015, 4
    %vm1017 = vcmask 121856
    %v1018 = vsel %vm1017, %v1016, %v1015
    %v1021 = vmul.f32 %v871, %v1018
    %v1022 = vmul.f32 %v884, %v1016
    %1025 = vrot.lane.b32.xlu0 %v1021, 64
    %v1026 = vpop.permute.xlu0 %1025
    %1027 = vrot.lane.b32.xlu0 %v1022, 64
    %v1028 = vpop.permute.xlu0 %1027
    %v1029 = vrot.slane %v1026, 4
    %v1030 = vsel %vm979, %v1029, %v1026
    %v1031 = vsel %vm979, %v1029, %v1028
    %v1034 = vadd.f32 %v933, %v1030
    %v1035 = vadd.f32 %v934, %v1031
    %s1036 = scalar_lea.vmem [#allocation7], 248
    %v1037 = vld [vmem:[%s1036] sm:$0xff]
    %1039 = vrot.lane.b32.xlu0 %v1037, 16
    %v1040 = vpop.permute.xlu0 %1039
    %v1041 = vrot.slane %v1040, 4
    %vm1042 = vcmask 130048
    %v1043 = vsel %vm1042, %v1041, %v1040
    %v1046 = vmul.f32 %v871, %v1043
    %v1047 = vmul.f32 %v884, %v1041
    %1050 = vrot.lane.b32.xlu0 %v1046, 64
    %v1051 = vpop.permute.xlu0 %1050
    %1052 = vrot.lane.b32.xlu0 %v1047, 64
    %v1053 = vpop.permute.xlu0 %1052
    %v1054 = vrot.slane %v1051, 4
    %v1055 = vsel %vm979, %v1054, %v1051
    %v1056 = vsel %vm979, %v1054, %v1053
    %v1059 = vadd.f32 %v958, %v1055
    %v1060 = vadd.f32 %v959, %v1056
    %s1061 = scalar_lea.vmem [#allocation7], 256
    %v1062 = vld [vmem:[%s1061] sm:$0xff]
    %1064 = vrot.lane.b32.xlu0 %v1062, 17
    %v1065 = vpop.permute.xlu0 %1064
    %v1066 = vrot.slane %v1065, 4
    %vm1067 = vcmask 138240
    %v1068 = vsel %vm1067, %v1066, %v1065
    %v1071 = vmul.f32 %v871, %v1068
    %v1072 = vmul.f32 %v884, %v1066
    %1075 = vrot.lane.b32.xlu0 %v1071, 60
    %v1076 = vpop.permute.xlu0 %1075
    %1077 = vrot.lane.b32.xlu0 %v1072, 60
    %v1078 = vpop.permute.xlu0 %1077
    %v1079 = vrot.slane %v1076, 4
    %vm1080 = vcmask 490496
    %v1081 = vsel %vm1080, %v1079, %v1076
    %v1082 = vsel %vm1080, %v1079, %v1078
    %v1085 = vadd.f32 %v984, %v1081
    %v1086 = vadd.f32 %v985, %v1082
    %s1087 = scalar_lea.vmem [#allocation7], 264
    %v1088 = vld [vmem:[%s1087] sm:$0xff]
    %1090 = vrot.lane.b32.xlu0 %v1088, 18
    %v1091 = vpop.permute.xlu0 %1090
    %v1092 = vrot.slane %v1091, 4
    %vm1093 = vcmask 146432
    %v1094 = vsel %vm1093, %v1092, %v1091
    %v1097 = vmul.f32 %v871, %v1094
    %v1098 = vmul.f32 %v884, %v1092
    %1101 = vrot.lane.b32.xlu0 %v1097, 60
    %v1102 = vpop.permute.xlu0 %1101
    %1103 = vrot.lane.b32.xlu0 %v1098, 60
    %v1104 = vpop.permute.xlu0 %1103
    %v1105 = vrot.slane %v1102, 4
    %v1106 = vsel %vm1080, %v1105, %v1102
    %v1107 = vsel %vm1080, %v1105, %v1104
    %v1110 = vadd.f32 %v1009, %v1106
    %v1111 = vadd.f32 %v1010, %v1107
    %s1112 = scalar_lea.vmem [#allocation7], 272
    %v1113 = vld [vmem:[%s1112] sm:$0xff]
    %1115 = vrot.lane.b32.xlu0 %v1113, 19
    %v1116 = vpop.permute.xlu0 %1115
    %v1117 = vrot.slane %v1116, 4
    %vm1118 = vcmask 154624
    %v1119 = vsel %vm1118, %v1117, %v1116
    %v1122 = vmul.f32 %v871, %v1119
    %v1123 = vmul.f32 %v884, %v1117
    %1126 = vrot.lane.b32.xlu0 %v1122, 60
    %v1127 = vpop.permute.xlu0 %1126
    %1128 = vrot.lane.b32.xlu0 %v1123, 60
    %v1129 = vpop.permute.xlu0 %1128
    %v1130 = vrot.slane %v1127, 4
    %v1131 = vsel %vm1080, %v1130, %v1127
    %v1132 = vsel %vm1080, %v1130, %v1129
    %v1135 = vadd.f32 %v1034, %v1131
    %v1136 = vadd.f32 %v1035, %v1132
    %s1137 = scalar_lea.vmem [#allocation7], 280
    %v1138 = vld [vmem:[%s1137] sm:$0xff]
    %1140 = vrot.lane.b32.xlu0 %v1138, 29
    %v1141 = vpop.permute.xlu0 %1140
    %v1142 = vrot.slane %v1141, 4
    %vm1143 = vcmask 236544
    %v1144 = vsel %vm1143, %v1142, %v1141
    %v1147 = vmul.f32 %v871, %v1144
    %v1148 = vmul.f32 %v884, %v1142
    %1151 = vrot.lane.b32.xlu0 %v1147, 51
    %v1152 = vpop.permute.xlu0 %1151
    %1153 = vrot.lane.b32.xlu0 %v1148, 51
    %v1154 = vpop.permute.xlu0 %1153
    %v1155 = vrot.slane %v1152, 4
    %vm1156 = vcmask 416768
    %v1157 = vsel %vm1156, %v1155, %v1152
    %v1158 = vsel %vm1156, %v1155, %v1154
    %v1161 = vadd.f32 %v1059, %v1157
    %v1162 = vadd.f32 %v1060, %v1158
    %s1163 = scalar_lea.vmem [#allocation7], 288
    %v1164 = vld [vmem:[%s1163] sm:$0xff]
    %1166 = vrot.lane.b32.xlu0 %v1164, 30
    %v1167 = vpop.permute.xlu0 %1166
    %v1168 = vrot.slane %v1167, 4
    %vm1169 = vcmask 244736
    %v1170 = vsel %vm1169, %v1168, %v1167
    %v1173 = vmul.f32 %v871, %v1170
    %v1174 = vmul.f32 %v884, %v1168
    %1177 = vrot.lane.b32.xlu0 %v1173, 47
    %v1178 = vpop.permute.xlu0 %1177
    %1179 = vrot.lane.b32.xlu0 %v1174, 47
    %v1180 = vpop.permute.xlu0 %1179
    %v1181 = vrot.slane %v1178, 4
    %vm1182 = vcmask 384000
    %v1183 = vsel %vm1182, %v1181, %v1178
    %v1184 = vsel %vm1182, %v1181, %v1180
    %v1187 = vadd.f32 %v1085, %v1183
    %v1188 = vadd.f32 %v1086, %v1184
    %s1189 = scalar_lea.vmem [#allocation7], 296
    %v1190 = vld [vmem:[%s1189] sm:$0xff]
    %1192 = vrot.lane.b32.xlu0 %v1190, 31
    %v1193 = vpop.permute.xlu0 %1192
    %v1194 = vrot.slane %v1193, 4
    %vm1195 = vcmask 252928
    %v1196 = vsel %vm1195, %v1194, %v1193
    %v1199 = vmul.f32 %v871, %v1196
    %v1200 = vmul.f32 %v884, %v1194
    %1203 = vrot.lane.b32.xlu0 %v1199, 47
    %v1204 = vpop.permute.xlu0 %1203
    %1205 = vrot.lane.b32.xlu0 %v1200, 47
    %v1206 = vpop.permute.xlu0 %1205
    %v1207 = vrot.slane %v1204, 4
    %v1208 = vsel %vm1182, %v1207, %v1204
    %v1209 = vsel %vm1182, %v1207, %v1206
    %v1212 = vadd.f32 %v1110, %v1208
    %v1213 = vadd.f32 %v1111, %v1209
    %s1214 = scalar_lea.vmem [#allocation7], 304
    %v1215 = vld [vmem:[%s1214] sm:$0xff]
    %1217 = vrot.lane.b32.xlu0 %v1215, 32
    %v1218 = vpop.permute.xlu0 %1217
    %v1219 = vrot.slane %v1218, 4
    %vm1220 = vcmask 261120
    %v1221 = vsel %vm1220, %v1219, %v1218
    %v1224 = vmul.f32 %v871, %v1221
    %v1225 = vmul.f32 %v884, %v1219
    %1228 = vrot.lane.b32.xlu0 %v1224, 47
    %v1229 = vpop.permute.xlu0 %1228
    %1230 = vrot.lane.b32.xlu0 %v1225, 47
    %v1231 = vpop.permute.xlu0 %1230
    %v1232 = vrot.slane %v1229, 4
    %v1233 = vsel %vm1182, %v1232, %v1229
    %v1234 = vsel %vm1182, %v1232, %v1231
    %v1237 = vadd.f32 %v1135, %v1233
    %v1238 = vadd.f32 %v1136, %v1234
    %s1239 = scalar_lea.vmem [#allocation7], 312
    %v1240 = vld [vmem:[%s1239] sm:$0xff]
    %1242 = vrot.lane.b32.xlu0 %v1240, 33
    %v1243 = vpop.permute.xlu0 %1242
    %v1244 = vrot.slane %v1243, 4
    %vm1245 = vcmask 269312
    %v1246 = vsel %vm1245, %v1244, %v1243
    %v1249 = vmul.f32 %v871, %v1246
    %v1250 = vmul.f32 %v884, %v1244
    %1253 = vrot.lane.b32.xlu0 %v1249, 47
    %v1254 = vpop.permute.xlu0 %1253
    %1255 = vrot.lane.b32.xlu0 %v1250, 47
    %v1256 = vpop.permute.xlu0 %1255
    %v1257 = vrot.slane %v1254, 4
    %v1258 = vsel %vm1182, %v1257, %v1254
    %v1259 = vsel %vm1182, %v1257, %v1256
    %v1262 = vadd.f32 %v1161, %v1258
    %v1263 = vadd.f32 %v1162, %v1259
    %s1264 = scalar_lea.vmem [#allocation7], 320
    %v1265 = vld [vmem:[%s1264] sm:$0xff]
    %1267 = vrot.lane.b32.xlu0 %v1265, 34
    %v1268 = vpop.permute.xlu0 %1267
    %v1269 = vrot.slane %v1268, 4
    %vm1270 = vcmask 277504
    %v1271 = vsel %vm1270, %v1269, %v1268
    %v1274 = vmul.f32 %v871, %v1271
    %v1275 = vmul.f32 %v884, %v1269
    %1278 = vrot.lane.b32.xlu0 %v1274, 43
    %v1279 = vpop.permute.xlu0 %1278
    %1280 = vrot.lane.b32.xlu0 %v1275, 43
    %v1281 = vpop.permute.xlu0 %1280
    %v1282 = vrot.slane %v1279, 4
    %vm1283 = vcmask 351232
    %v1284 = vsel %vm1283, %v1282, %v1279
    %v1285 = vsel %vm1283, %v1282, %v1281
    %v1288 = vadd.f32 %v1187, %v1284
    %v1289 = vadd.f32 %v1188, %v1285
    %s1290 = scalar_lea.vmem [#allocation7], 328
    %v1291 = vld [vmem:[%s1290] sm:$0xff]
    %1293 = vrot.lane.b32.xlu0 %v1291, 35
    %v1294 = vpop.permute.xlu0 %1293
    %v1295 = vrot.slane %v1294, 4
    %vm1296 = vcmask 285696
    %v1297 = vsel %vm1296, %v1295, %v1294
    %v1300 = vmul.f32 %v871, %v1297
    %v1301 = vmul.f32 %v884, %v1295
    %1304 = vrot.lane.b32.xlu0 %v1300, 43
    %v1305 = vpop.permute.xlu0 %1304
    %1306 = vrot.lane.b32.xlu0 %v1301, 43
    %v1307 = vpop.permute.xlu0 %1306
    %v1308 = vrot.slane %v1305, 4
    %v1309 = vsel %vm1283, %v1308, %v1305
    %v1310 = vsel %vm1283, %v1308, %v1307
    %v1313 = vadd.f32 %v1212, %v1309
    %v1314 = vadd.f32 %v1213, %v1310
    %s1315 = scalar_lea.vmem [#allocation7], 336
    %v1316 = vld [vmem:[%s1315] sm:$0xff]
    %1318 = vrot.lane.b32.xlu0 %v1316, 45
    %v1319 = vpop.permute.xlu0 %1318
    %v1320 = vrot.slane %v1319, 4
    %vm1321 = vcmask 367616
    %v1322 = vsel %vm1321, %v1320, %v1319
    %v1325 = vmul.f32 %v871, %v1322
    %v1326 = vmul.f32 %v884, %v1320
    %1329 = vrot.lane.b32.xlu0 %v1325, 34
    %v1330 = vpop.permute.xlu0 %1329
    %1331 = vrot.lane.b32.xlu0 %v1326, 34
    %v1332 = vpop.permute.xlu0 %1331
    %v1333 = vrot.slane %v1330, 4
    %v1334 = vsel %vm1270, %v1333, %v1330
    %v1335 = vsel %vm1270, %v1333, %v1332
    %v1338 = vadd.f32 %v1237, %v1334
    %v1339 = vadd.f32 %v1238, %v1335
    %s1340 = scalar_lea.vmem [#allocation7], 344
    %v1341 = vld [vmem:[%s1340] sm:$0xff]
    %1343 = vrot.lane.b32.xlu0 %v1341, 46
    %v1344 = vpop.permute.xlu0 %1343
    %v1345 = vrot.slane %v1344, 4
    %vm1346 = vcmask 375808
    %v1347 = vsel %vm1346, %v1345, %v1344
    %v1350 = vmul.f32 %v871, %v1347
    %v1351 = vmul.f32 %v884, %v1345
    %1354 = vrot.lane.b32.xlu0 %v1350, 34
    %v1355 = vpop.permute.xlu0 %1354
    %1356 = vrot.lane.b32.xlu0 %v1351, 34
    %v1357 = vpop.permute.xlu0 %1356
    %v1358 = vrot.slane %v1355, 4
    %v1359 = vsel %vm1270, %v1358, %v1355
    %v1360 = vsel %vm1270, %v1358, %v1357
    %v1363 = vadd.f32 %v1262, %v1359
    %v1364 = vadd.f32 %v1263, %v1360
    %s1365 = scalar_lea.vmem [#allocation7], 352
    %v1366 = vld [vmem:[%s1365] sm:$0xff]
    %1368 = vrot.lane.b32.xlu0 %v1366, 47
    %v1369 = vpop.permute.xlu0 %1368
    %v1370 = vrot.slane %v1369, 4
    %v1371 = vsel %vm1182, %v1370, %v1369
    %v1374 = vmul.f32 %v871, %v1371
    %v1375 = vmul.f32 %v884, %v1370
    %1378 = vrot.lane.b32.xlu0 %v1374, 30
    %v1379 = vpop.permute.xlu0 %1378
    %1380 = vrot.lane.b32.xlu0 %v1375, 30
    %v1381 = vpop.permute.xlu0 %1380
    %v1382 = vrot.slane %v1379, 4
    %v1383 = vsel %vm1169, %v1382, %v1379
    %v1384 = vsel %vm1169, %v1382, %v1381
    %v1387 = vadd.f32 %v1288, %v1383
    %v1388 = vadd.f32 %v1289, %v1384
    %s1389 = scalar_lea.vmem [#allocation7], 360
    %v1390 = vld [vmem:[%s1389] sm:$0xff]
    %1392 = vrot.lane.b32.xlu0 %v1390, 48
    %v1393 = vpop.permute.xlu0 %1392
    %v1394 = vrot.slane %v1393, 4
    %vm1395 = vcmask 392192
    %v1396 = vsel %vm1395, %v1394, %v1393
    %v1399 = vmul.f32 %v871, %v1396
    %v1400 = vmul.f32 %v884, %v1394
    %1403 = vrot.lane.b32.xlu0 %v1399, 30
    %v1404 = vpop.permute.xlu0 %1403
    %1405 = vrot.lane.b32.xlu0 %v1400, 30
    %v1406 = vpop.permute.xlu0 %1405
    %v1407 = vrot.slane %v1404, 4
    %v1408 = vsel %vm1169, %v1407, %v1404
    %v1409 = vsel %vm1169, %v1407, %v1406
    %v1412 = vadd.f32 %v1313, %v1408
    %v1413 = vadd.f32 %v1314, %v1409
    %s1414 = scalar_lea.vmem [#allocation7], 368
    %v1415 = vld [vmem:[%s1414] sm:$0xff]
    %1417 = vrot.lane.b32.xlu0 %v1415, 49
    %v1418 = vpop.permute.xlu0 %1417
    %v1419 = vrot.slane %v1418, 4
    %vm1420 = vcmask 400384
    %v1421 = vsel %vm1420, %v1419, %v1418
    %v1424 = vmul.f32 %v871, %v1421
    %v1425 = vmul.f32 %v884, %v1419
    %1428 = vrot.lane.b32.xlu0 %v1424, 30
    %v1429 = vpop.permute.xlu0 %1428
    %1430 = vrot.lane.b32.xlu0 %v1425, 30
    %v1431 = vpop.permute.xlu0 %1430
    %v1432 = vrot.slane %v1429, 4
    %v1433 = vsel %vm1169, %v1432, %v1429
    %v1434 = vsel %vm1169, %v1432, %v1431
    %v1437 = vadd.f32 %v1338, %v1433
    %v1438 = vadd.f32 %v1339, %v1434
    %s1439 = scalar_lea.vmem [#allocation7], 376
    %v1440 = vld [vmem:[%s1439] sm:$0xff]
    %1442 = vrot.lane.b32.xlu0 %v1440, 50
    %v1443 = vpop.permute.xlu0 %1442
    %v1444 = vrot.slane %v1443, 4
    %vm1445 = vcmask 408576
    %v1446 = vsel %vm1445, %v1444, %v1443
    %v1449 = vmul.f32 %v871, %v1446
    %v1450 = vmul.f32 %v884, %v1444
    %1453 = vrot.lane.b32.xlu0 %v1449, 30
    %v1454 = vpop.permute.xlu0 %1453
    %1455 = vrot.lane.b32.xlu0 %v1450, 30
    %v1456 = vpop.permute.xlu0 %1455
    %v1457 = vrot.slane %v1454, 4
    %v1458 = vsel %vm1169, %v1457, %v1454
    %v1459 = vsel %vm1169, %v1457, %v1456
    %v1462 = vadd.f32 %v1363, %v1458
    %v1463 = vadd.f32 %v1364, %v1459
    %s1464 = scalar_lea.vmem [#allocation7], 384
    %v1465 = vld [vmem:[%s1464] sm:$0xff]
    %1467 = vrot.lane.b32.xlu0 %v1465, 51
    %v1468 = vpop.permute.xlu0 %1467
    %v1469 = vrot.slane %v1468, 4
    %v1470 = vsel %vm1156, %v1469, %v1468
    %v1473 = vmul.f32 %v871, %v1470
    %v1474 = vmul.f32 %v884, %v1469
    %1477 = vrot.lane.b32.xlu0 %v1473, 26
    %v1478 = vpop.permute.xlu0 %1477
    %1479 = vrot.lane.b32.xlu0 %v1474, 26
    %v1480 = vpop.permute.xlu0 %1479
    %v1481 = vrot.slane %v1478, 4
    %vm1482 = vcmask 211968
    %v1483 = vsel %vm1482, %v1481, %v1478
    %v1484 = vsel %vm1482, %v1481, %v1480
    %v1487 = vadd.f32 %v1387, %v1483
    %v1488 = vadd.f32 %v1388, %v1484
    %1491 = vrot.lane.b32.xlu0 %v1412, 127
    %v1492 = vpop.permute.xlu0 %1491
    %1493 = vrot.lane.b32.xlu0 %v1413, 127
    %v1494 = vpop.permute.xlu0 %1493
    %v1495 = vrot.slane %v1492, 4
    %v1496 = vrot.slane %v1494, 4
    %v1497 = vsel %vm131, %v1495, %v1496
    %v1498 = vsel %vm851, %v1492, %v1497
    %v1501 = vadd.f32 %v1487, %v1498
    %v1502 = vadd.f32 %v1488, %v1494
    %1505 = vrot.lane.b32.xlu0 %v1462, 127
    %v1506 = vpop.permute.xlu0 %1505
    %1507 = vrot.lane.b32.xlu0 %v1463, 127
    %v1508 = vpop.permute.xlu0 %1507
    %v1509 = vrot.slane %v1506, 4
    %v1510 = vrot.slane %v1508, 4
    %v1511 = vsel %vm131, %v1509, %v1510
    %v1512 = vsel %vm851, %v1506, %v1511
    %v1515 = vadd.f32 %v1437, %v1512
    %v1516 = vadd.f32 %v1438, %v1508
    %1519 = vrot.lane.b32.xlu0 %v1515, 126
    %v1520 = vpop.permute.xlu0 %1519
    %1521 = vrot.lane.b32.xlu0 %v1516, 126
    %v1522 = vpop.permute.xlu0 %1521
    %v1523 = vrot.slane %v1520, 4
    %v1524 = vrot.slane %v1522, 4
    %v1525 = vsel %vm131, %v1523, %v1524
    %v1526 = vsel %vm825, %v1520, %v1525
    %v1529 = vadd.f32 %v1501, %v1526
    %v1530 = vadd.f32 %v1502, %v1522
    %v1533 = vrot.slane %v1529, 6
    %v1534 = vrot.slane %v1533, 4
    %v1535 = vrot.slane %v1530, 6
    %v1536 = vrot.slane %v1535, 4
    %v1539 = vadd.f32 %v1529, %v1534
    %v1540 = vadd.f32 %v1530, %v1536
    %v1541 = vxor.u32 %v1539, 2147483648
    %v1542 = vxor.u32 %v1540, 2147483648
    %v1543 = vmul.f32 %v1541, 1.442695
    %v1544 = vpow.pop %v1543
    %v1545 = vmul.f32 %v1542, 1.442695
    %v1546 = vpow.pop %v1545
    %v1547 = vadd.f32 %v1544, 1.0
    %v1548 = vadd.f32 %v1546, 1.0
    %v1549 = vrcp.pop %v1547
    %v1550 = vmul.f32 1.0, %v1549
    %v1551 = vrcp.pop %v1548
    %v1552 = vmul.f32 1.0, %v1551
    %v1555 = vlaneseq
    %v1556 = vshrl.u32 %v1555, 7
    %v1557 = vsub.s32 0, %v1556
    %v1558 = vrot.slane %v1550, %v1557
    %v1559 = vlaneseq
    %v1560 = vshrl.u32 %v1559, 7
    %v1561 = vsub.s32 4, %v1560
    %v1562 = vrot.slane %v1550, %v1561
    %v1563 = vlaneseq
    %v1564 = vshrl.u32 %v1563, 7
    %v1565 = vsub.s32 0, %v1564
    %v1566 = vrot.slane %v1552, %v1565
    %v1570 = vlaneseq
    %v1571 = vshrl.u32 %v1570, 7
    %v1572 = vsub.s32 0, %v1571
    %v1573 = vrot.slane %v1558, %v1572
    %v1574 = vlaneseq
    %v1575 = vshrl.u32 %v1574, 7
    %v1576 = vsub.s32 0, %v1575
    %v1577 = vrot.slane %v1562, %v1576
    %v1578 = vlaneseq
    %v1579 = vshrl.u32 %v1578, 7
    %v1580 = vsub.s32 0, %v1579
    %v1581 = vrot.slane %v1566, %v1580
    %1585 = vrot.lane.b32.xlu0 %v1573, 51
    %v1586 = vpop.permute.xlu0 %1585
    %1587 = vrot.lane.b32.xlu0 %v1577, 51
    %v1588 = vpop.permute.xlu0 %1587
    %1589 = vrot.lane.b32.xlu0 %v1581, 51
    %v1590 = vpop.permute.xlu0 %1589
    %v1591 = vsel %vm1156, %v1586, %v1588
    %v1592 = vsel %vm1156, %v1588, %v1590
    %v1595 = vmul.f32 %v129, %v1591
    %v1596 = vmul.f32 %v130, %v1592
    %1597 = vst [vmem:[#allocation9] sm:$0xf] %v1595
    %1598 = vst [vmem:[#allocation9 + $0x8] sm:$0xf] %v1596
    %v1599 = vlaneseq
    %v1600 = vshrl.u32 %v1599, 7
    %v1601 = vsub.s32 1, %v1600
    %v1602 = vrot.slane %v1550, %v1601
    %v1603 = vlaneseq
    %v1604 = vshrl.u32 %v1603, 7
    %v1605 = vsub.s32 5, %v1604
    %v1606 = vrot.slane %v1550, %v1605
    %v1607 = vlaneseq
    %v1608 = vshrl.u32 %v1607, 7
    %v1609 = vsub.s32 1, %v1608
    %v1610 = vrot.slane %v1552, %v1609
    %v1614 = vlaneseq
    %v1615 = vshrl.u32 %v1614, 7
    %v1616 = vsub.s32 1, %v1615
    %v1617 = vrot.slane %v1602, %v1616
    %v1618 = vlaneseq
    %v1619 = vshrl.u32 %v1618, 7
    %v1620 = vsub.s32 1, %v1619
    %v1621 = vrot.slane %v1606, %v1620
    %v1622 = vlaneseq
    %v1623 = vshrl.u32 %v1622, 7
    %v1624 = vsub.s32 1, %v1623
    %v1625 = vrot.slane %v1610, %v1624
    %1629 = vrot.lane.b32.xlu0 %v1617, 51
    %v1630 = vpop.permute.xlu0 %1629
    %1631 = vrot.lane.b32.xlu0 %v1621, 51
    %v1632 = vpop.permute.xlu0 %1631
    %1633 = vrot.lane.b32.xlu0 %v1625, 51
    %v1634 = vpop.permute.xlu0 %1633
    %v1635 = vsel %vm1156, %v1630, %v1632
    %v1636 = vsel %vm1156, %v1632, %v1634
    %v1639 = vmul.f32 %v129, %v1635
    %v1640 = vmul.f32 %v130, %v1636
    %1641 = vst [vmem:[#allocation9] sm:$0xf0] %v1639
    %1642 = vst [vmem:[#allocation9 + $0x8] sm:$0xf0] %v1640
    // Predicated region
    $region26: #{tpu_custom_call.1} parent=1 // pred_check
      _
    $region27: #{tpu_custom_call.1} parent=1 // pred_check_branch
      %1644 = sbr.rel (0) target = $region29
    $region28: #{tpu_custom_call.1} parent=1 // pred_region
      %s1646 = ssub.s32 256, 256
      %1647 = vsyncadd [#allocation6], %s1646
      %s1649 = sshll.u32 [#allocation9], 4
      %s1650 = int_to_ptr.vmem [resolvable:$true] %s1649
      %1652 = dma.vmem_to_hbm [thread:$0]  %s1650, 256, %s4, [#allocation6]
    $region29: #{tpu_custom_call.1} parent=1 // pred_fallthru
      _
    // Predicated region
    $region30: #{tpu_custom_call.1} parent=1 // pred_check
      _
    $region31: #{tpu_custom_call.1} parent=1 // pred_check_branch
      %1654 = sbr.rel (0) target = $region33
    $region32: #{tpu_custom_call.1} parent=1 // pred_region
      %1655 = dma.done [#allocation6], 256
    $region33: #{tpu_custom_call.1} parent=1 // pred_fallthru
      _
    %1656 = vsyncpa [#allocation5], 1
    %1657 = vsyncpa [#allocation8], 1
    %1658 = vsyncpa [#allocation6], 1

</llo_original>
